<compile_context>
chip_gen: v7x
topology: tpu7x:2x2x1
jax: 0.10.0
libtpu: 0.0.40
codegen_flags: <defaults>
</compile_context>

<pallas_src>
import jax
import jax.numpy as jnp
from jax import lax
from jax.experimental import pallas as pl
from jax.experimental.pallas import tpu as pltpu

BEAT_LEN = 32
MAX_BAR_LEN = 1024
BEAT_PAD = 128                       # beat table padded to a full 128-lane group
V_TOT = MAX_BAR_LEN + BEAT_PAD       # 1152 rows in the packed table
BEAT_SHIFT = BEAT_LEN.bit_length() - 1

assert BEAT_LEN & (BEAT_LEN - 1) == 0, "beat_len must be a power of two"
assert MAX_BAR_LEN & (MAX_BAR_LEN - 1) == 0, "max_bar_len must be a power of two"


def _round_up(x, m):
    return ((x + m - 1) // m) * m


def pack_tables(beat_tbl, bar_tbl):
    """One-time table prep (hoisted out of the per-call path).

    Packed layout: rows [0, 1024) = bar table, rows [1024, 1056) = beat table,
    rows [1056, 1152) = zeros (never selected).  Returned as a bf16 hi/lo
    split so the kernel can use exact-selection bf16 MXU passes.
    """
    beat_f32 = beat_tbl.astype(jnp.float32)
    bar_f32 = bar_tbl.astype(jnp.float32)
    beat_padded = jnp.pad(beat_f32, ((0, BEAT_PAD - BEAT_LEN), (0, 0)))
    tbl = jnp.concatenate([bar_f32, beat_padded], axis=0)            # (1152, E)
    tbl_hi = tbl.astype(jnp.bfloat16)
    tbl_lo = (tbl - tbl_hi.astype(jnp.float32)).astype(jnp.bfloat16)
    return tbl_hi, tbl_lo


def _pick_config():
    """Generation-aware (tile_t cap, vmem_limit_bytes, want_two_grid_steps)."""
    try:
        vmem = pltpu.get_tpu_info().vmem_capacity_bytes
    except Exception:
        vmem = 64 * 1024 * 1024                      # be conservative (v7x-like)
    if vmem >= 100 * 1024 * 1024:
        # v5e / v6e: 128 MiB VMEM, single TensorCore.
        return 4096, 96 * 1024 * 1024, False
    # v7x-like: 64 MiB per TC, 2 TCs -> smaller tiles, keep >= 2 grid steps.
    return 2048, 48 * 1024 * 1024, True


def _beat_pos_kernel(pos_ref, hi_ref, lo_ref, out_ref):
    # pos_ref: (tile_t, 1) int32          tokens on sublanes
    # hi_ref / lo_ref: (V_TOT, E) bf16    packed [bar; beat; zero-pad] tables
    # out_ref: (tile_t, E) f32            final (T, E) layout (no transpose after)
    pos = pos_ref[...]
    tile_t = pos.shape[0]

    # Bit ops instead of % / // (powers of two).  The original
    # `bar_pos[bar_pos >= max_bar_len] = max_bar_len - 1` is dead after the
    # modulo and is dropped (semantics unchanged).
    beat_idx = pos & (BEAT_LEN - 1)                          # (tile_t, 1) in [0, 32)
    bar_idx = (pos >> BEAT_SHIFT) & (MAX_BAR_LEN - 1)        # (tile_t, 1) in [0, 1024)

    # Single-compare bf16 one-hots (0/1 exact in bf16).  The beat one-hot spans
    # a full 128-lane group; lanes >= 32 can never match and hit the zero rows.
    bar_lanes = lax.broadcasted_iota(jnp.int32, (tile_t, MAX_BAR_LEN), 1)
    bar_oh = (bar_lanes == bar_idx).astype(jnp.bfloat16)     # (tile_t, 1024)
    beat_lanes = lax.broadcasted_iota(jnp.int32, (tile_t, BEAT_PAD), 1)
    beat_oh = (beat_lanes == beat_idx).astype(jnp.bfloat16)  # (tile_t, 128)

    # Static, 16-row-aligned slices of the packed tables (zero-cost views).
    bar_hi = hi_ref[:MAX_BAR_LEN, :]
    bar_lo = lo_ref[:MAX_BAR_LEN, :]
    beat_hi = hi_ref[MAX_BAR_LEN:V_TOT, :]
    beat_lo = lo_ref[MAX_BAR_LEN:V_TOT, :]

    # Two bf16 MXU passes (hi + lo) per table piece, f32 accumulation.
    acc = jnp.dot(bar_oh, bar_hi, preferred_element_type=jnp.float32)
    acc = acc + jnp.dot(bar_oh, bar_lo, preferred_element_type=jnp.float32)
    acc = acc + jnp.dot(beat_oh, beat_hi, preferred_element_type=jnp.float32)
    acc = acc + jnp.dot(beat_oh, beat_lo, preferred_element_type=jnp.float32)
    out_ref[...] = acc


def beat_position_encoder(pos, tbl_hi, tbl_lo):
    """pos: (B, S) int -> (B, S, E) float32.  tbl_hi / tbl_lo from pack_tables()."""
    B, S = pos.shape
    E = tbl_hi.shape[1]
    T = B * S

    tile_cap, vmem_limit, want_two_steps = _pick_config()
    if want_two_steps:
        # Ensure >= 2 grid steps (when T > 128) so both v7x TCs get work.
        tile_t = _round_up(max(1, -(-T // 2)), 128)
    else:
        tile_t = _round_up(T, 128)
    tile_t = max(128, min(tile_cap, tile_t))
    T_pad = _round_up(T, tile_t)

    pos_col = pos.reshape(T, 1).astype(jnp.int32)
    if T_pad != T:
        pos_col = jnp.pad(pos_col, ((0, T_pad - T), (0, 0)))

    grid = (T_pad // tile_t,)
    out = pl.pallas_call(
        _beat_pos_kernel,
        out_shape=jax.ShapeDtypeStruct((T_pad, E), jnp.float32),
        grid=grid,
        in_specs=[
            pl.BlockSpec((tile_t, 1), lambda i: (i, 0)),   # token positions
            pl.BlockSpec((V_TOT, E), lambda i: (0, 0)),    # hi table (VMEM-resident)
            pl.BlockSpec((V_TOT, E), lambda i: (0, 0)),    # lo table (VMEM-resident)
        ],
        out_specs=pl.BlockSpec((tile_t, E), lambda i: (i, 0)),
        compiler_params=pltpu.CompilerParams(
            dimension_semantics=("parallel",),
            vmem_limit_bytes=vmem_limit),
        cost_estimate=pl.CostEstimate(
            flops=2 * 2 * T_pad * V_TOT * E,                       # hi + lo passes
            transcendentals=0,
            bytes_accessed=4 * T_pad + 2 * 2 * V_TOT * E + 4 * T_pad * E),
    )(pos_col, tbl_hi, tbl_lo)

    # (T, E) layout comes straight out of the kernel; this is just a reshape.
    return out[:T].reshape(B, S, E)


def _reference(pos, beat_tbl, bar_tbl):
    beat_enc = jnp.take(beat_tbl, pos % BEAT_LEN, axis=0)
    bar_pos = (pos // BEAT_LEN) % MAX_BAR_LEN
    bar_enc = jnp.take(bar_tbl, bar_pos, axis=0)
    return beat_enc + bar_enc


if __name__ == "__main__":
    EMB_SZ = 32
    B, S = 2, 8

    key = jax.random.PRNGKey(0)
    k_beat, k_bar, k_pos = jax.random.split(key, 3)

    # Deterministic parameter init (nn.Embedding ~N(0,1), padding_idx=0 row zeroed).
    beat_tbl = jax.random.normal(k_beat, (BEAT_LEN, EMB_SZ), dtype=jnp.float32)
    beat_tbl = beat_tbl.at[0].set(0.0)
    bar_tbl = jax.random.normal(k_bar, (MAX_BAR_LEN, EMB_SZ), dtype=jnp.float32)
    bar_tbl = bar_tbl.at[0].set(0.0)

    # Non-negative positions, as produced upstream of this encoder.
    pos = jax.random.randint(k_pos, (B, S), 0, BEAT_LEN * MAX_BAR_LEN, dtype=jnp.int32)

    tbl_hi, tbl_lo = pack_tables(beat_tbl, bar_tbl)        # one-time prep (hoisted)
    encoder = jax.jit(beat_position_encoder)

    out = jax.block_until_ready(encoder(pos, tbl_hi, tbl_lo))

    ref = _reference(pos, beat_tbl, bar_tbl)
    assert out.shape == (B, S, EMB_SZ)
    # bf16 hi/lo split error <= ~2^-16 relative per looked-up entry (two entries
    # per output), i.e. O(1e-5) absolute for unit-scale tables -- far below a
    # single-pass bf16 truncation (~4e-3) and far above nothing else.
    assert jnp.allclose(out, ref, atol=2e-4, rtol=2e-4), \
        float(jnp.max(jnp.abs(out - ref)))

    print("KERNEL_OK")
</pallas_src>

<mosaic_0001>
module attributes {stable_mosaic.version = 11 : i64} {
  func.func @_beat_pos_kernel(%arg0: i32, %arg1: memref<128x1xi32, #tpu.memory_space<vmem>>, %arg2: memref<1152x32xbf16, #tpu.memory_space<vmem>>, %arg3: memref<1152x32xbf16, #tpu.memory_space<vmem>>, %arg4: memref<128x32xf32, #tpu.memory_space<vmem>>) attributes {dimension_semantics = [#tpu.dimension_semantics<parallel>], iteration_bounds = array<i64: 1>, scalar_prefetch = 0 : i64, scratch_operands = 0 : i64, tpu.core_type = #tpu.core_type<tc>, window_params = [{transform_indices = @transform_0, window_bounds = array<i64: 128, 1>}, {pipeline_mode = #tpu.pipeline_mode<synchronous>, transform_indices = @transform_1, window_bounds = array<i64: 1152, 32>}, {pipeline_mode = #tpu.pipeline_mode<synchronous>, transform_indices = @transform_2, window_bounds = array<i64: 1152, 32>}, {transform_indices = @transform_3, window_bounds = array<i64: 128, 32>}]} {
    %c0 = arith.constant 0 : index
    %c0_0 = arith.constant 0 : index
    %0 = vector.load %arg1[%c0, %c0_0] : memref<128x1xi32, #tpu.memory_space<vmem>>, vector<128x1xi32>
    %c31_i32 = arith.constant 31 : i32
    %1 = vector.broadcast %c31_i32 : i32 to vector<128x1xi32>
    %2 = arith.andi %0, %1 : vector<128x1xi32>
    %c5_i32 = arith.constant 5 : i32
    %3 = vector.broadcast %c5_i32 : i32 to vector<128x1xi32>
    %4 = arith.shrsi %0, %3 : vector<128x1xi32>
    %c1023_i32 = arith.constant 1023 : i32
    %5 = vector.broadcast %c1023_i32 : i32 to vector<128x1xi32>
    %6 = arith.andi %4, %5 : vector<128x1xi32>
    %7 = tpu.iota {dimensions = array<i32: 1>} : vector<128x1024xi32>
    %8 = vector.broadcast %6 : vector<128x1xi32> to vector<128x1024xi32>
    %9 = arith.cmpi eq, %7, %8 : vector<128x1024xi32>
    %10 = arith.extui %9 : vector<128x1024xi1> to vector<128x1024xi32>
    %11 = arith.sitofp %10 : vector<128x1024xi32> to vector<128x1024xf32>
    %12 = arith.truncf %11 : vector<128x1024xf32> to vector<128x1024xbf16>
    %13 = tpu.iota {dimensions = array<i32: 1>} : vector<128x128xi32>
    %14 = vector.broadcast %2 : vector<128x1xi32> to vector<128x128xi32>
    %15 = arith.cmpi eq, %13, %14 : vector<128x128xi32>
    %16 = arith.extui %15 : vector<128x128xi1> to vector<128x128xi32>
    %17 = arith.sitofp %16 : vector<128x128xi32> to vector<128x128xf32>
    %18 = arith.truncf %17 : vector<128x128xf32> to vector<128x128xbf16>
    %c0_1 = arith.constant 0 : index
    %c0_2 = arith.constant 0 : index
    %19 = vector.load %arg2[%c0_1, %c0_2] : memref<1152x32xbf16, #tpu.memory_space<vmem>>, vector<1024x32xbf16>
    %c0_3 = arith.constant 0 : index
    %c0_4 = arith.constant 0 : index
    %20 = vector.load %arg3[%c0_3, %c0_4] : memref<1152x32xbf16, #tpu.memory_space<vmem>>, vector<1024x32xbf16>
    %c1024 = arith.constant 1024 : index
    %c0_5 = arith.constant 0 : index
    %21 = vector.load %arg2[%c1024, %c0_5] : memref<1152x32xbf16, #tpu.memory_space<vmem>>, vector<128x32xbf16>
    %c1024_6 = arith.constant 1024 : index
    %c0_7 = arith.constant 0 : index
    %22 = vector.load %arg3[%c1024_6, %c0_7] : memref<1152x32xbf16, #tpu.memory_space<vmem>>, vector<128x32xbf16>
    %cst = arith.constant dense<0.000000e+00> : vector<128x32xf32>
    %23 = tpu.matmul %12, %19, %cst {dimension_numbers = #tpu.dot_dimension_numbers<[1], [0], [0], [1], [0, 0, 1, 1], [], []>} : vector<128x1024xbf16>, vector<1024x32xbf16>, vector<128x32xf32> -> vector<128x32xf32>
    %cst_8 = arith.constant dense<0.000000e+00> : vector<128x32xf32>
    %24 = tpu.matmul %12, %20, %cst_8 {dimension_numbers = #tpu.dot_dimension_numbers<[1], [0], [0], [1], [0, 0, 1, 1], [], []>} : vector<128x1024xbf16>, vector<1024x32xbf16>, vector<128x32xf32> -> vector<128x32xf32>
    %25 = arith.addf %23, %24 : vector<128x32xf32>
    %cst_9 = arith.constant dense<0.000000e+00> : vector<128x32xf32>
    %26 = tpu.matmul %18, %21, %cst_9 {dimension_numbers = #tpu.dot_dimension_numbers<[1], [0], [0], [1], [0, 0, 1, 1], [], []>} : vector<128x128xbf16>, vector<128x32xbf16>, vector<128x32xf32> -> vector<128x32xf32>
    %27 = arith.addf %25, %26 : vector<128x32xf32>
    %cst_10 = arith.constant dense<0.000000e+00> : vector<128x32xf32>
    %28 = tpu.matmul %18, %22, %cst_10 {dimension_numbers = #tpu.dot_dimension_numbers<[1], [0], [0], [1], [0, 0, 1, 1], [], []>} : vector<128x128xbf16>, vector<128x32xbf16>, vector<128x32xf32> -> vector<128x32xf32>
    %29 = arith.addf %27, %28 : vector<128x32xf32>
    %c0_11 = arith.constant 0 : index
    %c0_12 = arith.constant 0 : index
    %30 = vector.load %arg4[%c0_11, %c0_12] : memref<128x32xf32, #tpu.memory_space<vmem>>, vector<128x32xf32>
    tpu.vector_store %arg4[%c0_11, %c0_12], %29 {strides = array<i32>} : memref<128x32xf32, #tpu.memory_space<vmem>>, vector<128x32xf32>,
    return
  }
  func.func @transform_0(%arg0: i32) -> (i32, i32) {
    %c0_i32 = arith.constant 0 : i32
    %c0_i32_0 = arith.constant 0 : i32
    return %arg0, %c0_i32 : i32, i32
  }
  func.func @transform_1(%arg0: i32) -> (i32, i32) {
    %c0_i32 = arith.constant 0 : i32
    %c0_i32_0 = arith.constant 0 : i32
    %c0_i32_1 = arith.constant 0 : i32
    return %c0_i32, %c0_i32_0 : i32, i32
  }
  func.func @transform_2(%arg0: i32) -> (i32, i32) {
    %c0_i32 = arith.constant 0 : i32
    %c0_i32_0 = arith.constant 0 : i32
    %c0_i32_1 = arith.constant 0 : i32
    return %c0_i32, %c0_i32_0 : i32, i32
  }
  func.func @transform_3(%arg0: i32) -> (i32, i32) {
    %c0_i32 = arith.constant 0 : i32
    %c0_i32_0 = arith.constant 0 : i32
    return %arg0, %c0_i32 : i32, i32
  }
}

</mosaic_0001>

<llo_original>
// kernel: beat_position_encoder.1
$region0: #{beat_position_encoder.1}
  #allocation0 [shape = 'u32[]', space=smem, size = 0x4, offset = 0x4, fixed_abs, tag = 'smem constant byte address 0x4 - core index']
  #allocation1 [shape = 'u32[144,128]{1,0:T(1,128)}', space=vmem, size = 0x12000, scoped, tag = 'internal scratch']
  %s0 = inlined_call_operand.vmem [shape: s32[128,1], index: 0, kind: input, shape index: {}]
  %s1 = inlined_call_operand.vmem [shape: bf16[1152,32], index: 1, kind: input, shape index: {}]
  %s2 = inlined_call_operand.vmem [shape: bf16[1152,32], index: 2, kind: input, shape index: {}]
  %s3 = inlined_call_operand.vmem [shape: f32[128,32], index: 3, kind: output, shape index: {}]
  %s4 = sld [smem:[#allocation0]]
  $region22: #{beat_position_encoder.1} parent=0
    _
  %s6 = ssub.s32 1, %s4
  %s7 = scalar_select 0, %s6, %s4
  // Predicated region
  $region2: #{beat_position_encoder.1} parent=0 // pred_check
    _
  $region3: #{beat_position_encoder.1} parent=0 // pred_check_branch
    %9 = sbr.rel (0) target = $region5
  $region4: #{beat_position_encoder.1} parent=0 // pred_region
    _
  $region5: #{beat_position_encoder.1} parent=0 // pred_fallthru
    _
  // Predicated region
  $region6: #{beat_position_encoder.1} parent=0 // pred_check
    _
  $region7: #{beat_position_encoder.1} parent=0 // pred_check_branch
    %11 = sbr.rel (0) target = $region9
  $region8: #{beat_position_encoder.1} parent=0 // pred_region
    _
  $region9: #{beat_position_encoder.1} parent=0 // pred_fallthru
    _
  // Predicated region
  $region10: #{beat_position_encoder.1} parent=0 // pred_check
    _
  $region11: #{beat_position_encoder.1} parent=0 // pred_check_branch
    %13 = sbr.rel (0) target = $region13
  $region12: #{beat_position_encoder.1} parent=0 // pred_region
    _
  $region13: #{beat_position_encoder.1} parent=0 // pred_fallthru
    _
  %v15 = vld [vmem:[%s0] sm:$0xff]
  %v16 = vld [vmem:[%s0 + $0x8] sm:$0xff]
  %v17 = vld [vmem:[%s0 + $0x10] sm:$0xff]
  %v18 = vld [vmem:[%s0 + $0x18] sm:$0xff]
  %v19 = vld [vmem:[%s0 + $0x20] sm:$0xff]
  %v20 = vld [vmem:[%s0 + $0x28] sm:$0xff]
  %v21 = vld [vmem:[%s0 + $0x30] sm:$0xff]
  %v22 = vld [vmem:[%s0 + $0x38] sm:$0xff]
  %v23 = vld [vmem:[%s0 + $0x40] sm:$0xff]
  %v24 = vld [vmem:[%s0 + $0x48] sm:$0xff]
  %v25 = vld [vmem:[%s0 + $0x50] sm:$0xff]
  %v26 = vld [vmem:[%s0 + $0x58] sm:$0xff]
  %v27 = vld [vmem:[%s0 + $0x60] sm:$0xff]
  %v28 = vld [vmem:[%s0 + $0x68] sm:$0xff]
  %v29 = vld [vmem:[%s0 + $0x70] sm:$0xff]
  %v30 = vld [vmem:[%s0 + $0x78] sm:$0xff]
  %v31 = vand.u32 %v15, 31
  %v32 = vand.u32 %v16, 31
  %v33 = vand.u32 %v17, 31
  %v34 = vand.u32 %v18, 31
  %v35 = vand.u32 %v19, 31
  %v36 = vand.u32 %v20, 31
  %v37 = vand.u32 %v21, 31
  %v38 = vand.u32 %v22, 31
  %v39 = vand.u32 %v23, 31
  %v40 = vand.u32 %v24, 31
  %v41 = vand.u32 %v25, 31
  %v42 = vand.u32 %v26, 31
  %v43 = vand.u32 %v27, 31
  %v44 = vand.u32 %v28, 31
  %v45 = vand.u32 %v29, 31
  %v46 = vand.u32 %v30, 31
  %v47 = vshra.s32 %v15, 5
  %v48 = vshra.s32 %v16, 5
  %v49 = vshra.s32 %v17, 5
  %v50 = vshra.s32 %v18, 5
  %v51 = vshra.s32 %v19, 5
  %v52 = vshra.s32 %v20, 5
  %v53 = vshra.s32 %v21, 5
  %v54 = vshra.s32 %v22, 5
  %v55 = vshra.s32 %v23, 5
  %v56 = vshra.s32 %v24, 5
  %v57 = vshra.s32 %v25, 5
  %v58 = vshra.s32 %v26, 5
  %v59 = vshra.s32 %v27, 5
  %v60 = vshra.s32 %v28, 5
  %v61 = vshra.s32 %v29, 5
  %v62 = vshra.s32 %v30, 5
  %v63 = vand.u32 %v47, 1023
  %v64 = vand.u32 %v48, 1023
  %v65 = vand.u32 %v49, 1023
  %v66 = vand.u32 %v50, 1023
  %v67 = vand.u32 %v51, 1023
  %v68 = vand.u32 %v52, 1023
  %v69 = vand.u32 %v53, 1023
  %v70 = vand.u32 %v54, 1023
  %v71 = vand.u32 %v55, 1023
  %v72 = vand.u32 %v56, 1023
  %v73 = vand.u32 %v57, 1023
  %v74 = vand.u32 %v58, 1023
  %v75 = vand.u32 %v59, 1023
  %v76 = vand.u32 %v60, 1023
  %v77 = vand.u32 %v61, 1023
  %v78 = vand.u32 %v62, 1023
  %v79 = vlaneseq
  %v80 = vand.u32 %v79, 127
  %v81 = vadd.s32 %v80, 128
  %v82 = vadd.s32 %v80, 256
  %v83 = vadd.s32 %v80, 384
  %v84 = vadd.s32 %v80, 512
  %v85 = vadd.s32 %v80, 640
  %v86 = vadd.s32 %v80, 768
  %v87 = vadd.s32 %v80, 896
  %88 = vset.pattern.permute.xlu0 0
  %89 = vperm.xlu0 %88, %v63
  %v90 = vpop.permute.xlu0 %89
  %91 = vset.pattern.permute.xlu0 0
  %92 = vperm.xlu0 %91, %v64
  %v93 = vpop.permute.xlu0 %92
  %94 = vset.pattern.permute.xlu0 0
  %95 = vperm.xlu0 %94, %v65
  %v96 = vpop.permute.xlu0 %95
  %97 = vset.pattern.permute.xlu0 0
  %98 = vperm.xlu0 %97, %v66
  %v99 = vpop.permute.xlu0 %98
  %100 = vset.pattern.permute.xlu0 0
  %101 = vperm.xlu0 %100, %v67
  %v102 = vpop.permute.xlu0 %101
  %103 = vset.pattern.permute.xlu0 0
  %104 = vperm.xlu0 %103, %v68
  %v105 = vpop.permute.xlu0 %104
  %106 = vset.pattern.permute.xlu0 0
  %107 = vperm.xlu0 %106, %v69
  %v108 = vpop.permute.xlu0 %107
  %109 = vset.pattern.permute.xlu0 0
  %110 = vperm.xlu0 %109, %v70
  %v111 = vpop.permute.xlu0 %110
  %112 = vset.pattern.permute.xlu0 0
  %113 = vperm.xlu0 %112, %v71
  %v114 = vpop.permute.xlu0 %113
  %115 = vset.pattern.permute.xlu0 0
  %116 = vperm.xlu0 %115, %v72
  %v117 = vpop.permute.xlu0 %116
  %118 = vset.pattern.permute.xlu0 0
  %119 = vperm.xlu0 %118, %v73
  %v120 = vpop.permute.xlu0 %119
  %121 = vset.pattern.permute.xlu0 0
  %122 = vperm.xlu0 %121, %v74
  %v123 = vpop.permute.xlu0 %122
  %124 = vset.pattern.permute.xlu0 0
  %125 = vperm.xlu0 %124, %v75
  %v126 = vpop.permute.xlu0 %125
  %127 = vset.pattern.permute.xlu0 0
  %128 = vperm.xlu0 %127, %v76
  %v129 = vpop.permute.xlu0 %128
  %130 = vset.pattern.permute.xlu0 0
  %131 = vperm.xlu0 %130, %v77
  %v132 = vpop.permute.xlu0 %131
  %133 = vset.pattern.permute.xlu0 0
  %134 = vperm.xlu0 %133, %v78
  %v135 = vpop.permute.xlu0 %134
  %vm136 = vcmp.eq.s32.totalorder %v80, %v90
  %vm137 = vcmp.eq.s32.totalorder %v81, %v90
  %vm138 = vcmp.eq.s32.totalorder %v82, %v90
  %vm139 = vcmp.eq.s32.totalorder %v83, %v90
  %vm140 = vcmp.eq.s32.totalorder %v84, %v90
  %vm141 = vcmp.eq.s32.totalorder %v85, %v90
  %vm142 = vcmp.eq.s32.totalorder %v86, %v90
  %vm143 = vcmp.eq.s32.totalorder %v87, %v90
  %vm144 = vcmp.eq.s32.totalorder %v80, %v93
  %vm145 = vcmp.eq.s32.totalorder %v81, %v93
  %vm146 = vcmp.eq.s32.totalorder %v82, %v93
  %vm147 = vcmp.eq.s32.totalorder %v83, %v93
  %vm148 = vcmp.eq.s32.totalorder %v84, %v93
  %vm149 = vcmp.eq.s32.totalorder %v85, %v93
  %vm150 = vcmp.eq.s32.totalorder %v86, %v93
  %vm151 = vcmp.eq.s32.totalorder %v87, %v93
  %vm152 = vcmp.eq.s32.totalorder %v80, %v96
  %vm153 = vcmp.eq.s32.totalorder %v81, %v96
  %vm154 = vcmp.eq.s32.totalorder %v82, %v96
  %vm155 = vcmp.eq.s32.totalorder %v83, %v96
  %vm156 = vcmp.eq.s32.totalorder %v84, %v96
  %vm157 = vcmp.eq.s32.totalorder %v85, %v96
  %vm158 = vcmp.eq.s32.totalorder %v86, %v96
  %vm159 = vcmp.eq.s32.totalorder %v87, %v96
  %vm160 = vcmp.eq.s32.totalorder %v80, %v99
  %vm161 = vcmp.eq.s32.totalorder %v81, %v99
  %vm162 = vcmp.eq.s32.totalorder %v82, %v99
  %vm163 = vcmp.eq.s32.totalorder %v83, %v99
  %vm164 = vcmp.eq.s32.totalorder %v84, %v99
  %vm165 = vcmp.eq.s32.totalorder %v85, %v99
  %vm166 = vcmp.eq.s32.totalorder %v86, %v99
  %vm167 = vcmp.eq.s32.totalorder %v87, %v99
  %vm168 = vcmp.eq.s32.totalorder %v80, %v102
  %vm169 = vcmp.eq.s32.totalorder %v81, %v102
  %vm170 = vcmp.eq.s32.totalorder %v82, %v102
  %vm171 = vcmp.eq.s32.totalorder %v83, %v102
  %vm172 = vcmp.eq.s32.totalorder %v84, %v102
  %vm173 = vcmp.eq.s32.totalorder %v85, %v102
  %vm174 = vcmp.eq.s32.totalorder %v86, %v102
  %vm175 = vcmp.eq.s32.totalorder %v87, %v102
  %vm176 = vcmp.eq.s32.totalorder %v80, %v105
  %vm177 = vcmp.eq.s32.totalorder %v81, %v105
  %vm178 = vcmp.eq.s32.totalorder %v82, %v105
  %vm179 = vcmp.eq.s32.totalorder %v83, %v105
  %vm180 = vcmp.eq.s32.totalorder %v84, %v105
  %vm181 = vcmp.eq.s32.totalorder %v85, %v105
  %vm182 = vcmp.eq.s32.totalorder %v86, %v105
  %vm183 = vcmp.eq.s32.totalorder %v87, %v105
  %vm184 = vcmp.eq.s32.totalorder %v80, %v108
  %vm185 = vcmp.eq.s32.totalorder %v81, %v108
  %vm186 = vcmp.eq.s32.totalorder %v82, %v108
  %vm187 = vcmp.eq.s32.totalorder %v83, %v108
  %vm188 = vcmp.eq.s32.totalorder %v84, %v108
  %vm189 = vcmp.eq.s32.totalorder %v85, %v108
  %vm190 = vcmp.eq.s32.totalorder %v86, %v108
  %vm191 = vcmp.eq.s32.totalorder %v87, %v108
  %vm192 = vcmp.eq.s32.totalorder %v80, %v111
  %vm193 = vcmp.eq.s32.totalorder %v81, %v111
  %vm194 = vcmp.eq.s32.totalorder %v82, %v111
  %vm195 = vcmp.eq.s32.totalorder %v83, %v111
  %vm196 = vcmp.eq.s32.totalorder %v84, %v111
  %vm197 = vcmp.eq.s32.totalorder %v85, %v111
  %vm198 = vcmp.eq.s32.totalorder %v86, %v111
  %vm199 = vcmp.eq.s32.totalorder %v87, %v111
  %vm200 = vcmp.eq.s32.totalorder %v80, %v114
  %vm201 = vcmp.eq.s32.totalorder %v81, %v114
  %vm202 = vcmp.eq.s32.totalorder %v82, %v114
  %vm203 = vcmp.eq.s32.totalorder %v83, %v114
  %vm204 = vcmp.eq.s32.totalorder %v84, %v114
  %vm205 = vcmp.eq.s32.totalorder %v85, %v114
  %vm206 = vcmp.eq.s32.totalorder %v86, %v114
  %vm207 = vcmp.eq.s32.totalorder %v87, %v114
  %vm208 = vcmp.eq.s32.totalorder %v80, %v117
  %vm209 = vcmp.eq.s32.totalorder %v81, %v117
  %vm210 = vcmp.eq.s32.totalorder %v82, %v117
  %vm211 = vcmp.eq.s32.totalorder %v83, %v117
  %vm212 = vcmp.eq.s32.totalorder %v84, %v117
  %vm213 = vcmp.eq.s32.totalorder %v85, %v117
  %vm214 = vcmp.eq.s32.totalorder %v86, %v117
  %vm215 = vcmp.eq.s32.totalorder %v87, %v117
  %vm216 = vcmp.eq.s32.totalorder %v80, %v120
  %vm217 = vcmp.eq.s32.totalorder %v81, %v120
  %vm218 = vcmp.eq.s32.totalorder %v82, %v120
  %vm219 = vcmp.eq.s32.totalorder %v83, %v120
  %vm220 = vcmp.eq.s32.totalorder %v84, %v120
  %vm221 = vcmp.eq.s32.totalorder %v85, %v120
  %vm222 = vcmp.eq.s32.totalorder %v86, %v120
  %vm223 = vcmp.eq.s32.totalorder %v87, %v120
  %vm224 = vcmp.eq.s32.totalorder %v80, %v123
  %vm225 = vcmp.eq.s32.totalorder %v81, %v123
  %vm226 = vcmp.eq.s32.totalorder %v82, %v123
  %vm227 = vcmp.eq.s32.totalorder %v83, %v123
  %vm228 = vcmp.eq.s32.totalorder %v84, %v123
  %vm229 = vcmp.eq.s32.totalorder %v85, %v123
  %vm230 = vcmp.eq.s32.totalorder %v86, %v123
  %vm231 = vcmp.eq.s32.totalorder %v87, %v123
  %vm232 = vcmp.eq.s32.totalorder %v80, %v126
  %vm233 = vcmp.eq.s32.totalorder %v81, %v126
  %vm234 = vcmp.eq.s32.totalorder %v82, %v126
  %vm235 = vcmp.eq.s32.totalorder %v83, %v126
  %vm236 = vcmp.eq.s32.totalorder %v84, %v126
  %vm237 = vcmp.eq.s32.totalorder %v85, %v126
  %vm238 = vcmp.eq.s32.totalorder %v86, %v126
  %vm239 = vcmp.eq.s32.totalorder %v87, %v126
  %vm240 = vcmp.eq.s32.totalorder %v80, %v129
  %vm241 = vcmp.eq.s32.totalorder %v81, %v129
  %vm242 = vcmp.eq.s32.totalorder %v82, %v129
  %vm243 = vcmp.eq.s32.totalorder %v83, %v129
  %vm244 = vcmp.eq.s32.totalorder %v84, %v129
  %vm245 = vcmp.eq.s32.totalorder %v85, %v129
  %vm246 = vcmp.eq.s32.totalorder %v86, %v129
  %vm247 = vcmp.eq.s32.totalorder %v87, %v129
  %vm248 = vcmp.eq.s32.totalorder %v80, %v132
  %vm249 = vcmp.eq.s32.totalorder %v81, %v132
  %vm250 = vcmp.eq.s32.totalorder %v82, %v132
  %vm251 = vcmp.eq.s32.totalorder %v83, %v132
  %vm252 = vcmp.eq.s32.totalorder %v84, %v132
  %vm253 = vcmp.eq.s32.totalorder %v85, %v132
  %vm254 = vcmp.eq.s32.totalorder %v86, %v132
  %vm255 = vcmp.eq.s32.totalorder %v87, %v132
  %vm256 = vcmp.eq.s32.totalorder %v80, %v135
  %vm257 = vcmp.eq.s32.totalorder %v81, %v135
  %vm258 = vcmp.eq.s32.totalorder %v82, %v135
  %vm259 = vcmp.eq.s32.totalorder %v83, %v135
  %vm260 = vcmp.eq.s32.totalorder %v84, %v135
  %vm261 = vcmp.eq.s32.totalorder %v85, %v135
  %vm262 = vcmp.eq.s32.totalorder %v86, %v135
  %vm263 = vcmp.eq.s32.totalorder %v87, %v135
  %v264 = vsel %vm136, 1, 0
  %v265 = vsel %vm137, 1, 0
  %v266 = vsel %vm138, 1, 0
  %v267 = vsel %vm139, 1, 0
  %v268 = vsel %vm140, 1, 0
  %v269 = vsel %vm141, 1, 0
  %v270 = vsel %vm142, 1, 0
  %v271 = vsel %vm143, 1, 0
  %v272 = vsel %vm144, 1, 0
  %v273 = vsel %vm145, 1, 0
  %v274 = vsel %vm146, 1, 0
  %v275 = vsel %vm147, 1, 0
  %v276 = vsel %vm148, 1, 0
  %v277 = vsel %vm149, 1, 0
  %v278 = vsel %vm150, 1, 0
  %v279 = vsel %vm151, 1, 0
  %v280 = vsel %vm152, 1, 0
  %v281 = vsel %vm153, 1, 0
  %v282 = vsel %vm154, 1, 0
  %v283 = vsel %vm155, 1, 0
  %v284 = vsel %vm156, 1, 0
  %v285 = vsel %vm157, 1, 0
  %v286 = vsel %vm158, 1, 0
  %v287 = vsel %vm159, 1, 0
  %v288 = vsel %vm160, 1, 0
  %v289 = vsel %vm161, 1, 0
  %v290 = vsel %vm162, 1, 0
  %v291 = vsel %vm163, 1, 0
  %v292 = vsel %vm164, 1, 0
  %v293 = vsel %vm165, 1, 0
  %v294 = vsel %vm166, 1, 0
  %v295 = vsel %vm167, 1, 0
  %v296 = vsel %vm168, 1, 0
  %v297 = vsel %vm169, 1, 0
  %v298 = vsel %vm170, 1, 0
  %v299 = vsel %vm171, 1, 0
  %v300 = vsel %vm172, 1, 0
  %v301 = vsel %vm173, 1, 0
  %v302 = vsel %vm174, 1, 0
  %v303 = vsel %vm175, 1, 0
  %v304 = vsel %vm176, 1, 0
  %v305 = vsel %vm177, 1, 0
  %v306 = vsel %vm178, 1, 0
  %v307 = vsel %vm179, 1, 0
  %v308 = vsel %vm180, 1, 0
  %v309 = vsel %vm181, 1, 0
  %v310 = vsel %vm182, 1, 0
  %v311 = vsel %vm183, 1, 0
  %v312 = vsel %vm184, 1, 0
  %v313 = vsel %vm185, 1, 0
  %v314 = vsel %vm186, 1, 0
  %v315 = vsel %vm187, 1, 0
  %v316 = vsel %vm188, 1, 0
  %v317 = vsel %vm189, 1, 0
  %v318 = vsel %vm190, 1, 0
  %v319 = vsel %vm191, 1, 0
  %v320 = vsel %vm192, 1, 0
  %v321 = vsel %vm193, 1, 0
  %v322 = vsel %vm194, 1, 0
  %v323 = vsel %vm195, 1, 0
  %v324 = vsel %vm196, 1, 0
  %v325 = vsel %vm197, 1, 0
  %v326 = vsel %vm198, 1, 0
  %v327 = vsel %vm199, 1, 0
  %v328 = vsel %vm200, 1, 0
  %v329 = vsel %vm201, 1, 0
  %v330 = vsel %vm202, 1, 0
  %v331 = vsel %vm203, 1, 0
  %v332 = vsel %vm204, 1, 0
  %v333 = vsel %vm205, 1, 0
  %v334 = vsel %vm206, 1, 0
  %v335 = vsel %vm207, 1, 0
  %v336 = vsel %vm208, 1, 0
  %v337 = vsel %vm209, 1, 0
  %v338 = vsel %vm210, 1, 0
  %v339 = vsel %vm211, 1, 0
  %v340 = vsel %vm212, 1, 0
  %v341 = vsel %vm213, 1, 0
  %v342 = vsel %vm214, 1, 0
  %v343 = vsel %vm215, 1, 0
  %v344 = vsel %vm216, 1, 0
  %v345 = vsel %vm217, 1, 0
  %v346 = vsel %vm218, 1, 0
  %v347 = vsel %vm219, 1, 0
  %v348 = vsel %vm220, 1, 0
  %v349 = vsel %vm221, 1, 0
  %v350 = vsel %vm222, 1, 0
  %v351 = vsel %vm223, 1, 0
  %v352 = vsel %vm224, 1, 0
  %v353 = vsel %vm225, 1, 0
  %v354 = vsel %vm226, 1, 0
  %v355 = vsel %vm227, 1, 0
  %v356 = vsel %vm228, 1, 0
  %v357 = vsel %vm229, 1, 0
  %v358 = vsel %vm230, 1, 0
  %v359 = vsel %vm231, 1, 0
  %v360 = vsel %vm232, 1, 0
  %v361 = vsel %vm233, 1, 0
  %v362 = vsel %vm234, 1, 0
  %v363 = vsel %vm235, 1, 0
  %v364 = vsel %vm236, 1, 0
  %v365 = vsel %vm237, 1, 0
  %v366 = vsel %vm238, 1, 0
  %v367 = vsel %vm239, 1, 0
  %v368 = vsel %vm240, 1, 0
  %v369 = vsel %vm241, 1, 0
  %v370 = vsel %vm242, 1, 0
  %v371 = vsel %vm243, 1, 0
  %v372 = vsel %vm244, 1, 0
  %v373 = vsel %vm245, 1, 0
  %v374 = vsel %vm246, 1, 0
  %v375 = vsel %vm247, 1, 0
  %v376 = vsel %vm248, 1, 0
  %v377 = vsel %vm249, 1, 0
  %v378 = vsel %vm250, 1, 0
  %v379 = vsel %vm251, 1, 0
  %v380 = vsel %vm252, 1, 0
  %v381 = vsel %vm253, 1, 0
  %v382 = vsel %vm254, 1, 0
  %v383 = vsel %vm255, 1, 0
  %v384 = vsel %vm256, 1, 0
  %v385 = vsel %vm257, 1, 0
  %v386 = vsel %vm258, 1, 0
  %v387 = vsel %vm259, 1, 0
  %v388 = vsel %vm260, 1, 0
  %v389 = vsel %vm261, 1, 0
  %v390 = vsel %vm262, 1, 0
  %v391 = vsel %vm263, 1, 0
  %v392 = vcvt.s32.f32 %v264
  %v393 = vcvt.s32.f32 %v265
  %v394 = vcvt.s32.f32 %v266
  %v395 = vcvt.s32.f32 %v267
  %v396 = vcvt.s32.f32 %v268
  %v397 = vcvt.s32.f32 %v269
  %v398 = vcvt.s32.f32 %v270
  %v399 = vcvt.s32.f32 %v271
  %v400 = vcvt.s32.f32 %v272
  %v401 = vcvt.s32.f32 %v273
  %v402 = vcvt.s32.f32 %v274
  %v403 = vcvt.s32.f32 %v275
  %v404 = vcvt.s32.f32 %v276
  %v405 = vcvt.s32.f32 %v277
  %v406 = vcvt.s32.f32 %v278
  %v407 = vcvt.s32.f32 %v279
  %v408 = vcvt.s32.f32 %v280
  %v409 = vcvt.s32.f32 %v281
  %v410 = vcvt.s32.f32 %v282
  %v411 = vcvt.s32.f32 %v283
  %v412 = vcvt.s32.f32 %v284
  %v413 = vcvt.s32.f32 %v285
  %v414 = vcvt.s32.f32 %v286
  %v415 = vcvt.s32.f32 %v287
  %v416 = vcvt.s32.f32 %v288
  %v417 = vcvt.s32.f32 %v289
  %v418 = vcvt.s32.f32 %v290
  %v419 = vcvt.s32.f32 %v291
  %v420 = vcvt.s32.f32 %v292
  %v421 = vcvt.s32.f32 %v293
  %v422 = vcvt.s32.f32 %v294
  %v423 = vcvt.s32.f32 %v295
  %v424 = vcvt.s32.f32 %v296
  %v425 = vcvt.s32.f32 %v297
  %v426 = vcvt.s32.f32 %v298
  %v427 = vcvt.s32.f32 %v299
  %v428 = vcvt.s32.f32 %v300
  %v429 = vcvt.s32.f32 %v301
  %v430 = vcvt.s32.f32 %v302
  %v431 = vcvt.s32.f32 %v303
  %v432 = vcvt.s32.f32 %v304
  %v433 = vcvt.s32.f32 %v305
  %v434 = vcvt.s32.f32 %v306
  %v435 = vcvt.s32.f32 %v307
  %v436 = vcvt.s32.f32 %v308
  %v437 = vcvt.s32.f32 %v309
  %v438 = vcvt.s32.f32 %v310
  %v439 = vcvt.s32.f32 %v311
  %v440 = vcvt.s32.f32 %v312
  %v441 = vcvt.s32.f32 %v313
  %v442 = vcvt.s32.f32 %v314
  %v443 = vcvt.s32.f32 %v315
  %v444 = vcvt.s32.f32 %v316
  %v445 = vcvt.s32.f32 %v317
  %v446 = vcvt.s32.f32 %v318
  %v447 = vcvt.s32.f32 %v319
  %v448 = vcvt.s32.f32 %v320
  %v449 = vcvt.s32.f32 %v321
  %v450 = vcvt.s32.f32 %v322
  %v451 = vcvt.s32.f32 %v323
  %v452 = vcvt.s32.f32 %v324
  %v453 = vcvt.s32.f32 %v325
  %v454 = vcvt.s32.f32 %v326
  %v455 = vcvt.s32.f32 %v327
  %v456 = vcvt.s32.f32 %v328
  %v457 = vcvt.s32.f32 %v329
  %v458 = vcvt.s32.f32 %v330
  %v459 = vcvt.s32.f32 %v331
  %v460 = vcvt.s32.f32 %v332
  %v461 = vcvt.s32.f32 %v333
  %v462 = vcvt.s32.f32 %v334
  %v463 = vcvt.s32.f32 %v335
  %v464 = vcvt.s32.f32 %v336
  %v465 = vcvt.s32.f32 %v337
  %v466 = vcvt.s32.f32 %v338
  %v467 = vcvt.s32.f32 %v339
  %v468 = vcvt.s32.f32 %v340
  %v469 = vcvt.s32.f32 %v341
  %v470 = vcvt.s32.f32 %v342
  %v471 = vcvt.s32.f32 %v343
  %v472 = vcvt.s32.f32 %v344
  %v473 = vcvt.s32.f32 %v345
  %v474 = vcvt.s32.f32 %v346
  %v475 = vcvt.s32.f32 %v347
  %v476 = vcvt.s32.f32 %v348
  %v477 = vcvt.s32.f32 %v349
  %v478 = vcvt.s32.f32 %v350
  %v479 = vcvt.s32.f32 %v351
  %v480 = vcvt.s32.f32 %v352
  %v481 = vcvt.s32.f32 %v353
  %v482 = vcvt.s32.f32 %v354
  %v483 = vcvt.s32.f32 %v355
  %v484 = vcvt.s32.f32 %v356
  %v485 = vcvt.s32.f32 %v357
  %v486 = vcvt.s32.f32 %v358
  %v487 = vcvt.s32.f32 %v359
  %v488 = vcvt.s32.f32 %v360
  %v489 = vcvt.s32.f32 %v361
  %v490 = vcvt.s32.f32 %v362
  %v491 = vcvt.s32.f32 %v363
  %v492 = vcvt.s32.f32 %v364
  %v493 = vcvt.s32.f32 %v365
  %v494 = vcvt.s32.f32 %v366
  %v495 = vcvt.s32.f32 %v367
  %v496 = vcvt.s32.f32 %v368
  %v497 = vcvt.s32.f32 %v369
  %v498 = vcvt.s32.f32 %v370
  %v499 = vcvt.s32.f32 %v371
  %v500 = vcvt.s32.f32 %v372
  %v501 = vcvt.s32.f32 %v373
  %v502 = vcvt.s32.f32 %v374
  %v503 = vcvt.s32.f32 %v375
  %v504 = vcvt.s32.f32 %v376
  %v505 = vcvt.s32.f32 %v377
  %v506 = vcvt.s32.f32 %v378
  %v507 = vcvt.s32.f32 %v379
  %v508 = vcvt.s32.f32 %v380
  %v509 = vcvt.s32.f32 %v381
  %v510 = vcvt.s32.f32 %v382
  %v511 = vcvt.s32.f32 %v383
  %v512 = vcvt.s32.f32 %v384
  %v513 = vcvt.s32.f32 %v385
  %v514 = vcvt.s32.f32 %v386
  %v515 = vcvt.s32.f32 %v387
  %v516 = vcvt.s32.f32 %v388
  %v517 = vcvt.s32.f32 %v389
  %v518 = vcvt.s32.f32 %v390
  %v519 = vcvt.s32.f32 %v391
  %v520 = vpack.c.bf16 %v400, %v392
  %v521 = vpack.c.bf16 %v401, %v393
  %v522 = vpack.c.bf16 %v402, %v394
  %v523 = vpack.c.bf16 %v403, %v395
  %v524 = vpack.c.bf16 %v404, %v396
  %v525 = vpack.c.bf16 %v405, %v397
  %v526 = vpack.c.bf16 %v406, %v398
  %v527 = vpack.c.bf16 %v407, %v399
  %v528 = vpack.c.bf16 %v416, %v408
  %v529 = vpack.c.bf16 %v417, %v409
  %v530 = vpack.c.bf16 %v418, %v410
  %v531 = vpack.c.bf16 %v419, %v411
  %v532 = vpack.c.bf16 %v420, %v412
  %v533 = vpack.c.bf16 %v421, %v413
  %v534 = vpack.c.bf16 %v422, %v414
  %v535 = vpack.c.bf16 %v423, %v415
  %v536 = vpack.c.bf16 %v432, %v424
  %v537 = vpack.c.bf16 %v433, %v425
  %v538 = vpack.c.bf16 %v434, %v426
  %v539 = vpack.c.bf16 %v435, %v427
  %v540 = vpack.c.bf16 %v436, %v428
  %v541 = vpack.c.bf16 %v437, %v429
  %v542 = vpack.c.bf16 %v438, %v430
  %v543 = vpack.c.bf16 %v439, %v431
  %v544 = vpack.c.bf16 %v448, %v440
  %v545 = vpack.c.bf16 %v449, %v441
  %v546 = vpack.c.bf16 %v450, %v442
  %v547 = vpack.c.bf16 %v451, %v443
  %v548 = vpack.c.bf16 %v452, %v444
  %v549 = vpack.c.bf16 %v453, %v445
  %v550 = vpack.c.bf16 %v454, %v446
  %v551 = vpack.c.bf16 %v455, %v447
  %v552 = vpack.c.bf16 %v464, %v456
  %v553 = vpack.c.bf16 %v465, %v457
  %v554 = vpack.c.bf16 %v466, %v458
  %v555 = vpack.c.bf16 %v467, %v459
  %v556 = vpack.c.bf16 %v468, %v460
  %v557 = vpack.c.bf16 %v469, %v461
  %v558 = vpack.c.bf16 %v470, %v462
  %v559 = vpack.c.bf16 %v471, %v463
  %v560 = vpack.c.bf16 %v480, %v472
  %v561 = vpack.c.bf16 %v481, %v473
  %v562 = vpack.c.bf16 %v482, %v474
  %v563 = vpack.c.bf16 %v483, %v475
  %v564 = vpack.c.bf16 %v484, %v476
  %v565 = vpack.c.bf16 %v485, %v477
  %v566 = vpack.c.bf16 %v486, %v478
  %v567 = vpack.c.bf16 %v487, %v479
  %v568 = vpack.c.bf16 %v496, %v488
  %v569 = vpack.c.bf16 %v497, %v489
  %v570 = vpack.c.bf16 %v498, %v490
  %v571 = vpack.c.bf16 %v499, %v491
  %v572 = vpack.c.bf16 %v500, %v492
  %v573 = vpack.c.bf16 %v501, %v493
  %v574 = vpack.c.bf16 %v502, %v494
  %v575 = vpack.c.bf16 %v503, %v495
  %v576 = vpack.c.bf16 %v512, %v504
  %v577 = vpack.c.bf16 %v513, %v505
  %v578 = vpack.c.bf16 %v514, %v506
  %v579 = vpack.c.bf16 %v515, %v507
  %v580 = vpack.c.bf16 %v516, %v508
  %v581 = vpack.c.bf16 %v517, %v509
  %v582 = vpack.c.bf16 %v518, %v510
  %v583 = vpack.c.bf16 %v519, %v511
  %584 = vset.pattern.permute.xlu0 0
  %585 = vperm.xlu0 %584, %v31
  %v586 = vpop.permute.xlu0 %585
  %587 = vset.pattern.permute.xlu0 0
  %588 = vperm.xlu0 %587, %v32
  %v589 = vpop.permute.xlu0 %588
  %590 = vset.pattern.permute.xlu0 0
  %591 = vperm.xlu0 %590, %v33
  %v592 = vpop.permute.xlu0 %591
  %593 = vset.pattern.permute.xlu0 0
  %594 = vperm.xlu0 %593, %v34
  %v595 = vpop.permute.xlu0 %594
  %596 = vset.pattern.permute.xlu0 0
  %597 = vperm.xlu0 %596, %v35
  %v598 = vpop.permute.xlu0 %597
  %599 = vset.pattern.permute.xlu0 0
  %600 = vperm.xlu0 %599, %v36
  %v601 = vpop.permute.xlu0 %600
  %602 = vset.pattern.permute.xlu0 0
  %603 = vperm.xlu0 %602, %v37
  %v604 = vpop.permute.xlu0 %603
  %605 = vset.pattern.permute.xlu0 0
  %606 = vperm.xlu0 %605, %v38
  %v607 = vpop.permute.xlu0 %606
  %608 = vset.pattern.permute.xlu0 0
  %609 = vperm.xlu0 %608, %v39
  %v610 = vpop.permute.xlu0 %609
  %611 = vset.pattern.permute.xlu0 0
  %612 = vperm.xlu0 %611, %v40
  %v613 = vpop.permute.xlu0 %612
  %614 = vset.pattern.permute.xlu0 0
  %615 = vperm.xlu0 %614, %v41
  %v616 = vpop.permute.xlu0 %615
  %617 = vset.pattern.permute.xlu0 0
  %618 = vperm.xlu0 %617, %v42
  %v619 = vpop.permute.xlu0 %618
  %620 = vset.pattern.permute.xlu0 0
  %621 = vperm.xlu0 %620, %v43
  %v622 = vpop.permute.xlu0 %621
  %623 = vset.pattern.permute.xlu0 0
  %624 = vperm.xlu0 %623, %v44
  %v625 = vpop.permute.xlu0 %624
  %626 = vset.pattern.permute.xlu0 0
  %627 = vperm.xlu0 %626, %v45
  %v628 = vpop.permute.xlu0 %627
  %629 = vset.pattern.permute.xlu0 0
  %630 = vperm.xlu0 %629, %v46
  %v631 = vpop.permute.xlu0 %630
  %vm632 = vcmp.eq.s32.totalorder %v80, %v586
  %vm633 = vcmp.eq.s32.totalorder %v80, %v589
  %vm634 = vcmp.eq.s32.totalorder %v80, %v592
  %vm635 = vcmp.eq.s32.totalorder %v80, %v595
  %vm636 = vcmp.eq.s32.totalorder %v80, %v598
  %vm637 = vcmp.eq.s32.totalorder %v80, %v601
  %vm638 = vcmp.eq.s32.totalorder %v80, %v604
  %vm639 = vcmp.eq.s32.totalorder %v80, %v607
  %vm640 = vcmp.eq.s32.totalorder %v80, %v610
  %vm641 = vcmp.eq.s32.totalorder %v80, %v613
  %vm642 = vcmp.eq.s32.totalorder %v80, %v616
  %vm643 = vcmp.eq.s32.totalorder %v80, %v619
  %vm644 = vcmp.eq.s32.totalorder %v80, %v622
  %vm645 = vcmp.eq.s32.totalorder %v80, %v625
  %vm646 = vcmp.eq.s32.totalorder %v80, %v628
  %vm647 = vcmp.eq.s32.totalorder %v80, %v631
  %v648 = vsel %vm632, 1, 0
  %v649 = vsel %vm633, 1, 0
  %v650 = vsel %vm634, 1, 0
  %v651 = vsel %vm635, 1, 0
  %v652 = vsel %vm636, 1, 0
  %v653 = vsel %vm637, 1, 0
  %v654 = vsel %vm638, 1, 0
  %v655 = vsel %vm639, 1, 0
  %v656 = vsel %vm640, 1, 0
  %v657 = vsel %vm641, 1, 0
  %v658 = vsel %vm642, 1, 0
  %v659 = vsel %vm643, 1, 0
  %v660 = vsel %vm644, 1, 0
  %v661 = vsel %vm645, 1, 0
  %v662 = vsel %vm646, 1, 0
  %v663 = vsel %vm647, 1, 0
  %v664 = vcvt.s32.f32 %v648
  %v665 = vcvt.s32.f32 %v649
  %v666 = vcvt.s32.f32 %v650
  %v667 = vcvt.s32.f32 %v651
  %v668 = vcvt.s32.f32 %v652
  %v669 = vcvt.s32.f32 %v653
  %v670 = vcvt.s32.f32 %v654
  %v671 = vcvt.s32.f32 %v655
  %v672 = vcvt.s32.f32 %v656
  %v673 = vcvt.s32.f32 %v657
  %v674 = vcvt.s32.f32 %v658
  %v675 = vcvt.s32.f32 %v659
  %v676 = vcvt.s32.f32 %v660
  %v677 = vcvt.s32.f32 %v661
  %v678 = vcvt.s32.f32 %v662
  %v679 = vcvt.s32.f32 %v663
  %v680 = vpack.c.bf16 %v665, %v664
  %v681 = vpack.c.bf16 %v667, %v666
  %v682 = vpack.c.bf16 %v669, %v668
  %v683 = vpack.c.bf16 %v671, %v670
  %v684 = vpack.c.bf16 %v673, %v672
  %v685 = vpack.c.bf16 %v675, %v674
  %v686 = vpack.c.bf16 %v677, %v676
  %v687 = vpack.c.bf16 %v679, %v678
  %v688 = vld [vmem:[%s1] sm:$0xf]
  %v689 = vld [vmem:[%s1 + $0x4] sm:$0xf]
  %v690 = vld [vmem:[%s1 + $0x8] sm:$0xf]
  %v691 = vld [vmem:[%s1 + $0xc] sm:$0xf]
  %v692 = vld [vmem:[%s1 + $0x10] sm:$0xf]
  %v693 = vld [vmem:[%s1 + $0x14] sm:$0xf]
  %v694 = vld [vmem:[%s1 + $0x18] sm:$0xf]
  %v695 = vld [vmem:[%s1 + $0x1c] sm:$0xf]
  %v696 = vld [vmem:[%s1 + $0x20] sm:$0xf]
  %v697 = vld [vmem:[%s1 + $0x24] sm:$0xf]
  %v698 = vld [vmem:[%s1 + $0x28] sm:$0xf]
  %v699 = vld [vmem:[%s1 + $0x2c] sm:$0xf]
  %v700 = vld [vmem:[%s1 + $0x30] sm:$0xf]
  %v701 = vld [vmem:[%s1 + $0x34] sm:$0xf]
  %v702 = vld [vmem:[%s1 + $0x38] sm:$0xf]
  %v703 = vld [vmem:[%s1 + $0x3c] sm:$0xf]
  %v704 = vld [vmem:[%s1 + $0x40] sm:$0xf]
  %v705 = vld [vmem:[%s1 + $0x44] sm:$0xf]
  %v706 = vld [vmem:[%s1 + $0x48] sm:$0xf]
  %v707 = vld [vmem:[%s1 + $0x4c] sm:$0xf]
  %v708 = vld [vmem:[%s1 + $0x50] sm:$0xf]
  %v709 = vld [vmem:[%s1 + $0x54] sm:$0xf]
  %v710 = vld [vmem:[%s1 + $0x58] sm:$0xf]
  %v711 = vld [vmem:[%s1 + $0x5c] sm:$0xf]
  %v712 = vld [vmem:[%s1 + $0x60] sm:$0xf]
  %v713 = vld [vmem:[%s1 + $0x64] sm:$0xf]
  %v714 = vld [vmem:[%s1 + $0x68] sm:$0xf]
  %v715 = vld [vmem:[%s1 + $0x6c] sm:$0xf]
  %v716 = vld [vmem:[%s1 + $0x70] sm:$0xf]
  %v717 = vld [vmem:[%s1 + $0x74] sm:$0xf]
  %v718 = vld [vmem:[%s1 + $0x78] sm:$0xf]
  %v719 = vld [vmem:[%s1 + $0x7c] sm:$0xf]
  %v720 = vld [vmem:[%s1 + $0x80] sm:$0xf]
  %v721 = vld [vmem:[%s1 + $0x84] sm:$0xf]
  %v722 = vld [vmem:[%s1 + $0x88] sm:$0xf]
  %v723 = vld [vmem:[%s1 + $0x8c] sm:$0xf]
  %v724 = vld [vmem:[%s1 + $0x90] sm:$0xf]
  %v725 = vld [vmem:[%s1 + $0x94] sm:$0xf]
  %v726 = vld [vmem:[%s1 + $0x98] sm:$0xf]
  %v727 = vld [vmem:[%s1 + $0x9c] sm:$0xf]
  %v728 = vld [vmem:[%s1 + $0xa0] sm:$0xf]
  %v729 = vld [vmem:[%s1 + $0xa4] sm:$0xf]
  %v730 = vld [vmem:[%s1 + $0xa8] sm:$0xf]
  %v731 = vld [vmem:[%s1 + $0xac] sm:$0xf]
  %v732 = vld [vmem:[%s1 + $0xb0] sm:$0xf]
  %v733 = vld [vmem:[%s1 + $0xb4] sm:$0xf]
  %v734 = vld [vmem:[%s1 + $0xb8] sm:$0xf]
  %v735 = vld [vmem:[%s1 + $0xbc] sm:$0xf]
  %v736 = vld [vmem:[%s1 + $0xc0] sm:$0xf]
  %v737 = vld [vmem:[%s1 + $0xc4] sm:$0xf]
  %v738 = vld [vmem:[%s1 + $0xc8] sm:$0xf]
  %v739 = vld [vmem:[%s1 + $0xcc] sm:$0xf]
  %v740 = vld [vmem:[%s1 + $0xd0] sm:$0xf]
  %v741 = vld [vmem:[%s1 + $0xd4] sm:$0xf]
  %v742 = vld [vmem:[%s1 + $0xd8] sm:$0xf]
  %v743 = vld [vmem:[%s1 + $0xdc] sm:$0xf]
  %v744 = vld [vmem:[%s1 + $0xe0] sm:$0xf]
  %v745 = vld [vmem:[%s1 + $0xe4] sm:$0xf]
  %v746 = vld [vmem:[%s1 + $0xe8] sm:$0xf]
  %v747 = vld [vmem:[%s1 + $0xec] sm:$0xf]
  %v748 = vld [vmem:[%s1 + $0xf0] sm:$0xf]
  %v749 = vld [vmem:[%s1 + $0xf4] sm:$0xf]
  %v750 = vld [vmem:[%s1 + $0xf8] sm:$0xf]
  %v751 = vld [vmem:[%s1 + $0xfc] sm:$0xf]
  %v752 = vld [vmem:[%s1 + $0x100] sm:$0xf]
  %v753 = vld [vmem:[%s1 + $0x104] sm:$0xf]
  %v754 = vld [vmem:[%s1 + $0x108] sm:$0xf]
  %v755 = vld [vmem:[%s1 + $0x10c] sm:$0xf]
  %v756 = vld [vmem:[%s1 + $0x110] sm:$0xf]
  %v757 = vld [vmem:[%s1 + $0x114] sm:$0xf]
  %v758 = vld [vmem:[%s1 + $0x118] sm:$0xf]
  %v759 = vld [vmem:[%s1 + $0x11c] sm:$0xf]
  %v760 = vld [vmem:[%s1 + $0x120] sm:$0xf]
  %v761 = vld [vmem:[%s1 + $0x124] sm:$0xf]
  %v762 = vld [vmem:[%s1 + $0x128] sm:$0xf]
  %v763 = vld [vmem:[%s1 + $0x12c] sm:$0xf]
  %v764 = vld [vmem:[%s1 + $0x130] sm:$0xf]
  %v765 = vld [vmem:[%s1 + $0x134] sm:$0xf]
  %v766 = vld [vmem:[%s1 + $0x138] sm:$0xf]
  %v767 = vld [vmem:[%s1 + $0x13c] sm:$0xf]
  %v768 = vld [vmem:[%s1 + $0x140] sm:$0xf]
  %v769 = vld [vmem:[%s1 + $0x144] sm:$0xf]
  %v770 = vld [vmem:[%s1 + $0x148] sm:$0xf]
  %v771 = vld [vmem:[%s1 + $0x14c] sm:$0xf]
  %v772 = vld [vmem:[%s1 + $0x150] sm:$0xf]
  %v773 = vld [vmem:[%s1 + $0x154] sm:$0xf]
  %v774 = vld [vmem:[%s1 + $0x158] sm:$0xf]
  %v775 = vld [vmem:[%s1 + $0x15c] sm:$0xf]
  %v776 = vld [vmem:[%s1 + $0x160] sm:$0xf]
  %v777 = vld [vmem:[%s1 + $0x164] sm:$0xf]
  %v778 = vld [vmem:[%s1 + $0x168] sm:$0xf]
  %v779 = vld [vmem:[%s1 + $0x16c] sm:$0xf]
  %v780 = vld [vmem:[%s1 + $0x170] sm:$0xf]
  %v781 = vld [vmem:[%s1 + $0x174] sm:$0xf]
  %v782 = vld [vmem:[%s1 + $0x178] sm:$0xf]
  %v783 = vld [vmem:[%s1 + $0x17c] sm:$0xf]
  %v784 = vld [vmem:[%s1 + $0x180] sm:$0xf]
  %v785 = vld [vmem:[%s1 + $0x184] sm:$0xf]
  %v786 = vld [vmem:[%s1 + $0x188] sm:$0xf]
  %v787 = vld [vmem:[%s1 + $0x18c] sm:$0xf]
  %v788 = vld [vmem:[%s1 + $0x190] sm:$0xf]
  %v789 = vld [vmem:[%s1 + $0x194] sm:$0xf]
  %v790 = vld [vmem:[%s1 + $0x198] sm:$0xf]
  %v791 = vld [vmem:[%s1 + $0x19c] sm:$0xf]
  %v792 = vld [vmem:[%s1 + $0x1a0] sm:$0xf]
  %v793 = vld [vmem:[%s1 + $0x1a4] sm:$0xf]
  %v794 = vld [vmem:[%s1 + $0x1a8] sm:$0xf]
  %v795 = vld [vmem:[%s1 + $0x1ac] sm:$0xf]
  %v796 = vld [vmem:[%s1 + $0x1b0] sm:$0xf]
  %v797 = vld [vmem:[%s1 + $0x1b4] sm:$0xf]
  %v798 = vld [vmem:[%s1 + $0x1b8] sm:$0xf]
  %v799 = vld [vmem:[%s1 + $0x1bc] sm:$0xf]
  %v800 = vld [vmem:[%s1 + $0x1c0] sm:$0xf]
  %v801 = vld [vmem:[%s1 + $0x1c4] sm:$0xf]
  %v802 = vld [vmem:[%s1 + $0x1c8] sm:$0xf]
  %v803 = vld [vmem:[%s1 + $0x1cc] sm:$0xf]
  %v804 = vld [vmem:[%s1 + $0x1d0] sm:$0xf]
  %v805 = vld [vmem:[%s1 + $0x1d4] sm:$0xf]
  %v806 = vld [vmem:[%s1 + $0x1d8] sm:$0xf]
  %v807 = vld [vmem:[%s1 + $0x1dc] sm:$0xf]
  %v808 = vld [vmem:[%s1 + $0x1e0] sm:$0xf]
  %v809 = vld [vmem:[%s1 + $0x1e4] sm:$0xf]
  %v810 = vld [vmem:[%s1 + $0x1e8] sm:$0xf]
  %v811 = vld [vmem:[%s1 + $0x1ec] sm:$0xf]
  %v812 = vld [vmem:[%s1 + $0x1f0] sm:$0xf]
  %v813 = vld [vmem:[%s1 + $0x1f4] sm:$0xf]
  %v814 = vld [vmem:[%s1 + $0x1f8] sm:$0xf]
  %v815 = vld [vmem:[%s1 + $0x1fc] sm:$0xf]
  %v816 = vld [vmem:[%s2] sm:$0xf]
  %v817 = vld [vmem:[%s2 + $0x4] sm:$0xf]
  %v818 = vld [vmem:[%s2 + $0x8] sm:$0xf]
  %v819 = vld [vmem:[%s2 + $0xc] sm:$0xf]
  %v820 = vld [vmem:[%s2 + $0x10] sm:$0xf]
  %v821 = vld [vmem:[%s2 + $0x14] sm:$0xf]
  %v822 = vld [vmem:[%s2 + $0x18] sm:$0xf]
  %v823 = vld [vmem:[%s2 + $0x1c] sm:$0xf]
  %v824 = vld [vmem:[%s2 + $0x20] sm:$0xf]
  %v825 = vld [vmem:[%s2 + $0x24] sm:$0xf]
  %v826 = vld [vmem:[%s2 + $0x28] sm:$0xf]
  %v827 = vld [vmem:[%s2 + $0x2c] sm:$0xf]
  %v828 = vld [vmem:[%s2 + $0x30] sm:$0xf]
  %v829 = vld [vmem:[%s2 + $0x34] sm:$0xf]
  %v830 = vld [vmem:[%s2 + $0x38] sm:$0xf]
  %v831 = vld [vmem:[%s2 + $0x3c] sm:$0xf]
  %v832 = vld [vmem:[%s2 + $0x40] sm:$0xf]
  %v833 = vld [vmem:[%s2 + $0x44] sm:$0xf]
  %v834 = vld [vmem:[%s2 + $0x48] sm:$0xf]
  %v835 = vld [vmem:[%s2 + $0x4c] sm:$0xf]
  %v836 = vld [vmem:[%s2 + $0x50] sm:$0xf]
  %v837 = vld [vmem:[%s2 + $0x54] sm:$0xf]
  %v838 = vld [vmem:[%s2 + $0x58] sm:$0xf]
  %v839 = vld [vmem:[%s2 + $0x5c] sm:$0xf]
  %v840 = vld [vmem:[%s2 + $0x60] sm:$0xf]
  %v841 = vld [vmem:[%s2 + $0x64] sm:$0xf]
  %v842 = vld [vmem:[%s2 + $0x68] sm:$0xf]
  %v843 = vld [vmem:[%s2 + $0x6c] sm:$0xf]
  %v844 = vld [vmem:[%s2 + $0x70] sm:$0xf]
  %v845 = vld [vmem:[%s2 + $0x74] sm:$0xf]
  %v846 = vld [vmem:[%s2 + $0x78] sm:$0xf]
  %v847 = vld [vmem:[%s2 + $0x7c] sm:$0xf]
  %v848 = vld [vmem:[%s2 + $0x80] sm:$0xf]
  %v849 = vld [vmem:[%s2 + $0x84] sm:$0xf]
  %v850 = vld [vmem:[%s2 + $0x88] sm:$0xf]
  %v851 = vld [vmem:[%s2 + $0x8c] sm:$0xf]
  %v852 = vld [vmem:[%s2 + $0x90] sm:$0xf]
  %v853 = vld [vmem:[%s2 + $0x94] sm:$0xf]
  %v854 = vld [vmem:[%s2 + $0x98] sm:$0xf]
  %v855 = vld [vmem:[%s2 + $0x9c] sm:$0xf]
  %v856 = vld [vmem:[%s2 + $0xa0] sm:$0xf]
  %v857 = vld [vmem:[%s2 + $0xa4] sm:$0xf]
  %v858 = vld [vmem:[%s2 + $0xa8] sm:$0xf]
  %v859 = vld [vmem:[%s2 + $0xac] sm:$0xf]
  %v860 = vld [vmem:[%s2 + $0xb0] sm:$0xf]
  %v861 = vld [vmem:[%s2 + $0xb4] sm:$0xf]
  %v862 = vld [vmem:[%s2 + $0xb8] sm:$0xf]
  %v863 = vld [vmem:[%s2 + $0xbc] sm:$0xf]
  %v864 = vld [vmem:[%s2 + $0xc0] sm:$0xf]
  %v865 = vld [vmem:[%s2 + $0xc4] sm:$0xf]
  %v866 = vld [vmem:[%s2 + $0xc8] sm:$0xf]
  %v867 = vld [vmem:[%s2 + $0xcc] sm:$0xf]
  %v868 = vld [vmem:[%s2 + $0xd0] sm:$0xf]
  %v869 = vld [vmem:[%s2 + $0xd4] sm:$0xf]
  %v870 = vld [vmem:[%s2 + $0xd8] sm:$0xf]
  %v871 = vld [vmem:[%s2 + $0xdc] sm:$0xf]
  %v872 = vld [vmem:[%s2 + $0xe0] sm:$0xf]
  %v873 = vld [vmem:[%s2 + $0xe4] sm:$0xf]
  %v874 = vld [vmem:[%s2 + $0xe8] sm:$0xf]
  %v875 = vld [vmem:[%s2 + $0xec] sm:$0xf]
  %v876 = vld [vmem:[%s2 + $0xf0] sm:$0xf]
  %v877 = vld [vmem:[%s2 + $0xf4] sm:$0xf]
  %v878 = vld [vmem:[%s2 + $0xf8] sm:$0xf]
  %v879 = vld [vmem:[%s2 + $0xfc] sm:$0xf]
  %v880 = vld [vmem:[%s2 + $0x100] sm:$0xf]
  %v881 = vld [vmem:[%s2 + $0x104] sm:$0xf]
  %v882 = vld [vmem:[%s2 + $0x108] sm:$0xf]
  %v883 = vld [vmem:[%s2 + $0x10c] sm:$0xf]
  %v884 = vld [vmem:[%s2 + $0x110] sm:$0xf]
  %v885 = vld [vmem:[%s2 + $0x114] sm:$0xf]
  %v886 = vld [vmem:[%s2 + $0x118] sm:$0xf]
  %v887 = vld [vmem:[%s2 + $0x11c] sm:$0xf]
  %v888 = vld [vmem:[%s2 + $0x120] sm:$0xf]
  %v889 = vld [vmem:[%s2 + $0x124] sm:$0xf]
  %v890 = vld [vmem:[%s2 + $0x128] sm:$0xf]
  %v891 = vld [vmem:[%s2 + $0x12c] sm:$0xf]
  %v892 = vld [vmem:[%s2 + $0x130] sm:$0xf]
  %v893 = vld [vmem:[%s2 + $0x134] sm:$0xf]
  %v894 = vld [vmem:[%s2 + $0x138] sm:$0xf]
  %v895 = vld [vmem:[%s2 + $0x13c] sm:$0xf]
  %v896 = vld [vmem:[%s2 + $0x140] sm:$0xf]
  %v897 = vld [vmem:[%s2 + $0x144] sm:$0xf]
  %v898 = vld [vmem:[%s2 + $0x148] sm:$0xf]
  %v899 = vld [vmem:[%s2 + $0x14c] sm:$0xf]
  %v900 = vld [vmem:[%s2 + $0x150] sm:$0xf]
  %v901 = vld [vmem:[%s2 + $0x154] sm:$0xf]
  %v902 = vld [vmem:[%s2 + $0x158] sm:$0xf]
  %v903 = vld [vmem:[%s2 + $0x15c] sm:$0xf]
  %v904 = vld [vmem:[%s2 + $0x160] sm:$0xf]
  %v905 = vld [vmem:[%s2 + $0x164] sm:$0xf]
  %v906 = vld [vmem:[%s2 + $0x168] sm:$0xf]
  %v907 = vld [vmem:[%s2 + $0x16c] sm:$0xf]
  %v908 = vld [vmem:[%s2 + $0x170] sm:$0xf]
  %v909 = vld [vmem:[%s2 + $0x174] sm:$0xf]
  %v910 = vld [vmem:[%s2 + $0x178] sm:$0xf]
  %v911 = vld [vmem:[%s2 + $0x17c] sm:$0xf]
  %v912 = vld [vmem:[%s2 + $0x180] sm:$0xf]
  %v913 = vld [vmem:[%s2 + $0x184] sm:$0xf]
  %v914 = vld [vmem:[%s2 + $0x188] sm:$0xf]
  %v915 = vld [vmem:[%s2 + $0x18c] sm:$0xf]
  %v916 = vld [vmem:[%s2 + $0x190] sm:$0xf]
  %v917 = vld [vmem:[%s2 + $0x194] sm:$0xf]
  %v918 = vld [vmem:[%s2 + $0x198] sm:$0xf]
  %v919 = vld [vmem:[%s2 + $0x19c] sm:$0xf]
  %v920 = vld [vmem:[%s2 + $0x1a0] sm:$0xf]
  %v921 = vld [vmem:[%s2 + $0x1a4] sm:$0xf]
  %v922 = vld [vmem:[%s2 + $0x1a8] sm:$0xf]
  %v923 = vld [vmem:[%s2 + $0x1ac] sm:$0xf]
  %v924 = vld [vmem:[%s2 + $0x1b0] sm:$0xf]
  %v925 = vld [vmem:[%s2 + $0x1b4] sm:$0xf]
  %v926 = vld [vmem:[%s2 + $0x1b8] sm:$0xf]
  %v927 = vld [vmem:[%s2 + $0x1bc] sm:$0xf]
  %v928 = vld [vmem:[%s2 + $0x1c0] sm:$0xf]
  %v929 = vld [vmem:[%s2 + $0x1c4] sm:$0xf]
  %v930 = vld [vmem:[%s2 + $0x1c8] sm:$0xf]
  %v931 = vld [vmem:[%s2 + $0x1cc] sm:$0xf]
  %v932 = vld [vmem:[%s2 + $0x1d0] sm:$0xf]
  %v933 = vld [vmem:[%s2 + $0x1d4] sm:$0xf]
  %v934 = vld [vmem:[%s2 + $0x1d8] sm:$0xf]
  %v935 = vld [vmem:[%s2 + $0x1dc] sm:$0xf]
  %v936 = vld [vmem:[%s2 + $0x1e0] sm:$0xf]
  %v937 = vld [vmem:[%s2 + $0x1e4] sm:$0xf]
  %v938 = vld [vmem:[%s2 + $0x1e8] sm:$0xf]
  %v939 = vld [vmem:[%s2 + $0x1ec] sm:$0xf]
  %v940 = vld [vmem:[%s2 + $0x1f0] sm:$0xf]
  %v941 = vld [vmem:[%s2 + $0x1f4] sm:$0xf]
  %v942 = vld [vmem:[%s2 + $0x1f8] sm:$0xf]
  %v943 = vld [vmem:[%s2 + $0x1fc] sm:$0xf]
  %v944 = vld [vmem:[%s1 + $0x200] sm:$0xf]
  %v945 = vld [vmem:[%s1 + $0x204] sm:$0xf]
  %v946 = vld [vmem:[%s1 + $0x208] sm:$0xf]
  %v947 = vld [vmem:[%s1 + $0x20c] sm:$0xf]
  %v948 = vld [vmem:[%s1 + $0x210] sm:$0xf]
  %v949 = vld [vmem:[%s1 + $0x214] sm:$0xf]
  %v950 = vld [vmem:[%s1 + $0x218] sm:$0xf]
  %v951 = vld [vmem:[%s1 + $0x21c] sm:$0xf]
  %v952 = vld [vmem:[%s1 + $0x220] sm:$0xf]
  %v953 = vld [vmem:[%s1 + $0x224] sm:$0xf]
  %v954 = vld [vmem:[%s1 + $0x228] sm:$0xf]
  %v955 = vld [vmem:[%s1 + $0x22c] sm:$0xf]
  %v956 = vld [vmem:[%s1 + $0x230] sm:$0xf]
  %v957 = vld [vmem:[%s1 + $0x234] sm:$0xf]
  %v958 = vld [vmem:[%s1 + $0x238] sm:$0xf]
  %v959 = vld [vmem:[%s1 + $0x23c] sm:$0xf]
  %v960 = vld [vmem:[%s2 + $0x200] sm:$0xf]
  %v961 = vld [vmem:[%s2 + $0x204] sm:$0xf]
  %v962 = vld [vmem:[%s2 + $0x208] sm:$0xf]
  %v963 = vld [vmem:[%s2 + $0x20c] sm:$0xf]
  %v964 = vld [vmem:[%s2 + $0x210] sm:$0xf]
  %v965 = vld [vmem:[%s2 + $0x214] sm:$0xf]
  %v966 = vld [vmem:[%s2 + $0x218] sm:$0xf]
  %v967 = vld [vmem:[%s2 + $0x21c] sm:$0xf]
  %v968 = vld [vmem:[%s2 + $0x220] sm:$0xf]
  %v969 = vld [vmem:[%s2 + $0x224] sm:$0xf]
  %v970 = vld [vmem:[%s2 + $0x228] sm:$0xf]
  %v971 = vld [vmem:[%s2 + $0x22c] sm:$0xf]
  %v972 = vld [vmem:[%s2 + $0x230] sm:$0xf]
  %v973 = vld [vmem:[%s2 + $0x234] sm:$0xf]
  %v974 = vld [vmem:[%s2 + $0x238] sm:$0xf]
  %v975 = vld [vmem:[%s2 + $0x23c] sm:$0xf]
  %v1104 = vunpack.c.l.b16 %v816
  %v1105 = vunpack.c.l.b16 %v817
  %v1106 = vunpack.c.l.b16 %v818
  %v1107 = vunpack.c.l.b16 %v819
  %v1108 = vunpack.c.l.b16 %v820
  %v1109 = vunpack.c.l.b16 %v821
  %v1110 = vunpack.c.l.b16 %v822
  %v1111 = vunpack.c.l.b16 %v823
  %v1112 = vunpack.c.l.b16 %v824
  %v1113 = vunpack.c.l.b16 %v825
  %v1114 = vunpack.c.l.b16 %v826
  %v1115 = vunpack.c.l.b16 %v827
  %v1116 = vunpack.c.l.b16 %v828
  %v1117 = vunpack.c.l.b16 %v829
  %v1118 = vunpack.c.l.b16 %v830
  %v1119 = vunpack.c.l.b16 %v831
  %v1120 = vunpack.c.l.b16 %v832
  %v1121 = vunpack.c.l.b16 %v833
  %v1122 = vunpack.c.l.b16 %v834
  %v1123 = vunpack.c.l.b16 %v835
  %v1124 = vunpack.c.l.b16 %v836
  %v1125 = vunpack.c.l.b16 %v837
  %v1126 = vunpack.c.l.b16 %v838
  %v1127 = vunpack.c.l.b16 %v839
  %v1128 = vunpack.c.l.b16 %v840
  %v1129 = vunpack.c.l.b16 %v841
  %v1130 = vunpack.c.l.b16 %v842
  %v1131 = vunpack.c.l.b16 %v843
  %v1132 = vunpack.c.l.b16 %v844
  %v1133 = vunpack.c.l.b16 %v845
  %v1134 = vunpack.c.l.b16 %v846
  %v1135 = vunpack.c.l.b16 %v847
  %v1136 = vunpack.c.l.b16 %v848
  %v1137 = vunpack.c.l.b16 %v849
  %v1138 = vunpack.c.l.b16 %v850
  %v1139 = vunpack.c.l.b16 %v851
  %v1140 = vunpack.c.l.b16 %v852
  %v1141 = vunpack.c.l.b16 %v853
  %v1142 = vunpack.c.l.b16 %v854
  %v1143 = vunpack.c.l.b16 %v855
  %v1144 = vunpack.c.l.b16 %v856
  %v1145 = vunpack.c.l.b16 %v857
  %v1146 = vunpack.c.l.b16 %v858
  %v1147 = vunpack.c.l.b16 %v859
  %v1148 = vunpack.c.l.b16 %v860
  %v1149 = vunpack.c.l.b16 %v861
  %v1150 = vunpack.c.l.b16 %v862
  %v1151 = vunpack.c.l.b16 %v863
  %v1152 = vunpack.c.l.b16 %v864
  %v1153 = vunpack.c.l.b16 %v865
  %v1154 = vunpack.c.l.b16 %v866
  %v1155 = vunpack.c.l.b16 %v867
  %v1156 = vunpack.c.l.b16 %v868
  %v1157 = vunpack.c.l.b16 %v869
  %v1158 = vunpack.c.l.b16 %v870
  %v1159 = vunpack.c.l.b16 %v871
  %v1160 = vunpack.c.l.b16 %v872
  %v1161 = vunpack.c.l.b16 %v873
  %v1162 = vunpack.c.l.b16 %v874
  %v1163 = vunpack.c.l.b16 %v875
  %v1164 = vunpack.c.l.b16 %v876
  %v1165 = vunpack.c.l.b16 %v877
  %v1166 = vunpack.c.l.b16 %v878
  %v1167 = vunpack.c.l.b16 %v879
  %v1168 = vunpack.c.l.b16 %v880
  %v1169 = vunpack.c.l.b16 %v881
  %v1170 = vunpack.c.l.b16 %v882
  %v1171 = vunpack.c.l.b16 %v883
  %v1172 = vunpack.c.l.b16 %v884
  %v1173 = vunpack.c.l.b16 %v885
  %v1174 = vunpack.c.l.b16 %v886
  %v1175 = vunpack.c.l.b16 %v887
  %v1176 = vunpack.c.l.b16 %v888
  %v1177 = vunpack.c.l.b16 %v889
  %v1178 = vunpack.c.l.b16 %v890
  %v1179 = vunpack.c.l.b16 %v891
  %v1180 = vunpack.c.l.b16 %v892
  %v1181 = vunpack.c.l.b16 %v893
  %v1182 = vunpack.c.l.b16 %v894
  %v1183 = vunpack.c.l.b16 %v895
  %v1184 = vunpack.c.l.b16 %v896
  %v1185 = vunpack.c.l.b16 %v897
  %v1186 = vunpack.c.l.b16 %v898
  %v1187 = vunpack.c.l.b16 %v899
  %v1188 = vunpack.c.l.b16 %v900
  %v1189 = vunpack.c.l.b16 %v901
  %v1190 = vunpack.c.l.b16 %v902
  %v1191 = vunpack.c.l.b16 %v903
  %v1192 = vunpack.c.l.b16 %v904
  %v1193 = vunpack.c.l.b16 %v905
  %v1194 = vunpack.c.l.b16 %v906
  %v1195 = vunpack.c.l.b16 %v907
  %v1196 = vunpack.c.l.b16 %v908
  %v1197 = vunpack.c.l.b16 %v909
  %v1198 = vunpack.c.l.b16 %v910
  %v1199 = vunpack.c.l.b16 %v911
  %v1200 = vunpack.c.l.b16 %v912
  %v1201 = vunpack.c.l.b16 %v913
  %v1202 = vunpack.c.l.b16 %v914
  %v1203 = vunpack.c.l.b16 %v915
  %v1204 = vunpack.c.l.b16 %v916
  %v1205 = vunpack.c.l.b16 %v917
  %v1206 = vunpack.c.l.b16 %v918
  %v1207 = vunpack.c.l.b16 %v919
  %v1208 = vunpack.c.l.b16 %v920
  %v1209 = vunpack.c.l.b16 %v921
  %v1210 = vunpack.c.l.b16 %v922
  %v1211 = vunpack.c.l.b16 %v923
  %v1212 = vunpack.c.l.b16 %v924
  %v1213 = vunpack.c.l.b16 %v925
  %v1214 = vunpack.c.l.b16 %v926
  %v1215 = vunpack.c.l.b16 %v927
  %v1216 = vunpack.c.l.b16 %v928
  %v1217 = vunpack.c.l.b16 %v929
  %v1218 = vunpack.c.l.b16 %v930
  %v1219 = vunpack.c.l.b16 %v931
  %v1220 = vunpack.c.l.b16 %v932
  %v1221 = vunpack.c.l.b16 %v933
  %v1222 = vunpack.c.l.b16 %v934
  %v1223 = vunpack.c.l.b16 %v935
  %v1224 = vunpack.c.l.b16 %v936
  %v1225 = vunpack.c.l.b16 %v937
  %v1226 = vunpack.c.l.b16 %v938
  %v1227 = vunpack.c.l.b16 %v939
  %v1228 = vunpack.c.l.b16 %v940
  %v1229 = vunpack.c.l.b16 %v941
  %v1230 = vunpack.c.l.b16 %v942
  %v1231 = vunpack.c.l.b16 %v943
  %v1232 = vpack.c.b16 %v1105, %v1104
  %v1233 = vpack.c.b16 %v1107, %v1106
  %v1234 = vpack.c.b16 %v1109, %v1108
  %v1235 = vpack.c.b16 %v1111, %v1110
  %v1236 = vpack.c.b16 %v1113, %v1112
  %v1237 = vpack.c.b16 %v1115, %v1114
  %v1238 = vpack.c.b16 %v1117, %v1116
  %v1239 = vpack.c.b16 %v1119, %v1118
  %v1240 = vpack.c.b16 %v1121, %v1120
  %v1241 = vpack.c.b16 %v1123, %v1122
  %v1242 = vpack.c.b16 %v1125, %v1124
  %v1243 = vpack.c.b16 %v1127, %v1126
  %v1244 = vpack.c.b16 %v1129, %v1128
  %v1245 = vpack.c.b16 %v1131, %v1130
  %v1246 = vpack.c.b16 %v1133, %v1132
  %v1247 = vpack.c.b16 %v1135, %v1134
  %v1248 = vpack.c.b16 %v1137, %v1136
  %v1249 = vpack.c.b16 %v1139, %v1138
  %v1250 = vpack.c.b16 %v1141, %v1140
  %v1251 = vpack.c.b16 %v1143, %v1142
  %v1252 = vpack.c.b16 %v1145, %v1144
  %v1253 = vpack.c.b16 %v1147, %v1146
  %v1254 = vpack.c.b16 %v1149, %v1148
  %v1255 = vpack.c.b16 %v1151, %v1150
  %v1256 = vpack.c.b16 %v1153, %v1152
  %v1257 = vpack.c.b16 %v1155, %v1154
  %v1258 = vpack.c.b16 %v1157, %v1156
  %v1259 = vpack.c.b16 %v1159, %v1158
  %v1260 = vpack.c.b16 %v1161, %v1160
  %v1261 = vpack.c.b16 %v1163, %v1162
  %v1262 = vpack.c.b16 %v1165, %v1164
  %v1263 = vpack.c.b16 %v1167, %v1166
  %v1264 = vpack.c.b16 %v1169, %v1168
  %v1265 = vpack.c.b16 %v1171, %v1170
  %v1266 = vpack.c.b16 %v1173, %v1172
  %v1267 = vpack.c.b16 %v1175, %v1174
  %v1268 = vpack.c.b16 %v1177, %v1176
  %v1269 = vpack.c.b16 %v1179, %v1178
  %v1270 = vpack.c.b16 %v1181, %v1180
  %v1271 = vpack.c.b16 %v1183, %v1182
  %v1272 = vpack.c.b16 %v1185, %v1184
  %v1273 = vpack.c.b16 %v1187, %v1186
  %v1274 = vpack.c.b16 %v1189, %v1188
  %v1275 = vpack.c.b16 %v1191, %v1190
  %v1276 = vpack.c.b16 %v1193, %v1192
  %v1277 = vpack.c.b16 %v1195, %v1194
  %v1278 = vpack.c.b16 %v1197, %v1196
  %v1279 = vpack.c.b16 %v1199, %v1198
  %v1280 = vpack.c.b16 %v1201, %v1200
  %v1281 = vpack.c.b16 %v1203, %v1202
  %v1282 = vpack.c.b16 %v1205, %v1204
  %v1283 = vpack.c.b16 %v1207, %v1206
  %v1284 = vpack.c.b16 %v1209, %v1208
  %v1285 = vpack.c.b16 %v1211, %v1210
  %v1286 = vpack.c.b16 %v1213, %v1212
  %v1287 = vpack.c.b16 %v1215, %v1214
  %v1288 = vpack.c.b16 %v1217, %v1216
  %v1289 = vpack.c.b16 %v1219, %v1218
  %v1290 = vpack.c.b16 %v1221, %v1220
  %v1291 = vpack.c.b16 %v1223, %v1222
  %v1292 = vpack.c.b16 %v1225, %v1224
  %v1293 = vpack.c.b16 %v1227, %v1226
  %v1294 = vpack.c.b16 %v1229, %v1228
  %v1295 = vpack.c.b16 %v1231, %v1230
  %1360 = vmatprep.subr.bf16.mxu0 0
  %1361 = vmatpush1.bf16.msra.mxu0 %v1232
  %1362 = vmatprep.subr.bf16.mxu0 0
  %1363 = vmatpush1.bf16.msra.mxu0 %v1233
  %1364 = vmatprep.subr.bf16.mxu0 0
  %1365 = vmatpush1.bf16.msra.mxu0 %v1234
  %1366 = vmatprep.subr.bf16.mxu0 0
  %1367 = vmatpush1.bf16.msra.mxu0 %v1235
  %1368 = vmatprep.subr.bf16.mxu0 0
  %1369 = vmatpush1.bf16.msra.mxu0 %v1236
  %1370 = vmatprep.subr.bf16.mxu0 0
  %1371 = vmatpush1.bf16.msra.mxu0 %v1237
  %1372 = vmatprep.subr.bf16.mxu0 0
  %1373 = vmatpush1.bf16.msra.mxu0 %v1238
  %1374 = vmatprep.subr.bf16.mxu0 0
  %1375 = vmatpush1.bf16.msra.mxu0 %v1239
  %1376 = vmatprep.subr.bf16.mxu0 0
  %1377 = vmatpush1.bf16.msra.mxu0 %v1240
  %1378 = vmatprep.subr.bf16.mxu0 0
  %1379 = vmatpush1.bf16.msra.mxu0 %v1241
  %1380 = vmatprep.subr.bf16.mxu0 0
  %1381 = vmatpush1.bf16.msra.mxu0 %v1242
  %1382 = vmatprep.subr.bf16.mxu0 0
  %1383 = vmatpush1.bf16.msra.mxu0 %v1243
  %1384 = vmatprep.subr.bf16.mxu0 0
  %1385 = vmatpush1.bf16.msra.mxu0 %v1244
  %1386 = vmatprep.subr.bf16.mxu0 0
  %1387 = vmatpush1.bf16.msra.mxu0 %v1245
  %1388 = vmatprep.subr.bf16.mxu0 0
  %1389 = vmatpush1.bf16.msra.mxu0 %v1246
  %1390 = vmatprep.subr.bf16.mxu0 0
  %1391 = vmatpush1.bf16.msra.mxu0 %v1247
  %1392 = vmatprep.mubr.bf16.mxu0 %v521
  %1393 = vmatmul.mubr.bf16.gmra.mrb[0].mxu0 %v520
  %v1394 = vpop.f32.mrb[0].mxu0
  %v1395 = vadd.f32 0.0, %v1394
  %v1396 = vpop.f32.mrb[0].mxu0
  %v1397 = vpop.f32.mrb[0].mxu0
  %v1398 = vadd.f32 0.0, %v1397
  %v1399 = vpop.f32.mrb[0].mxu0
  %1400 = vmatprep.mubr.bf16.mxu0 %v529
  %1401 = vmatmul.mubr.bf16.gmra.mrb[0].mxu0 %v528
  %v1402 = vpop.f32.mrb[0].mxu0
  %v1403 = vadd.f32 0.0, %v1402
  %v1404 = vpop.f32.mrb[0].mxu0
  %v1405 = vpop.f32.mrb[0].mxu0
  %v1406 = vadd.f32 0.0, %v1405
  %v1407 = vpop.f32.mrb[0].mxu0
  %1408 = vmatprep.mubr.bf16.mxu0 %v537
  %1409 = vmatmul.mubr.bf16.gmra.mrb[0].mxu0 %v536
  %v1410 = vpop.f32.mrb[0].mxu0
  %v1411 = vadd.f32 0.0, %v1410
  %v1412 = vpop.f32.mrb[0].mxu0
  %v1413 = vpop.f32.mrb[0].mxu0
  %v1414 = vadd.f32 0.0, %v1413
  %v1415 = vpop.f32.mrb[0].mxu0
  %1416 = vmatprep.mubr.bf16.mxu0 %v545
  %1417 = vmatmul.mubr.bf16.gmra.mrb[0].mxu0 %v544
  %v1418 = vpop.f32.mrb[0].mxu0
  %v1419 = vadd.f32 0.0, %v1418
  %v1420 = vpop.f32.mrb[0].mxu0
  %v1421 = vpop.f32.mrb[0].mxu0
  %v1422 = vadd.f32 0.0, %v1421
  %v1423 = vpop.f32.mrb[0].mxu0
  %1424 = vmatprep.mubr.bf16.mxu0 %v553
  %1425 = vmatmul.mubr.bf16.gmra.mrb[0].mxu0 %v552
  %v1426 = vpop.f32.mrb[0].mxu0
  %v1427 = vadd.f32 0.0, %v1426
  %v1428 = vpop.f32.mrb[0].mxu0
  %v1429 = vpop.f32.mrb[0].mxu0
  %v1430 = vadd.f32 0.0, %v1429
  %v1431 = vpop.f32.mrb[0].mxu0
  %1432 = vmatprep.mubr.bf16.mxu0 %v561
  %1433 = vmatmul.mubr.bf16.gmra.mrb[0].mxu0 %v560
  %v1434 = vpop.f32.mrb[0].mxu0
  %v1435 = vadd.f32 0.0, %v1434
  %v1436 = vpop.f32.mrb[0].mxu0
  %v1437 = vpop.f32.mrb[0].mxu0
  %v1438 = vadd.f32 0.0, %v1437
  %v1439 = vpop.f32.mrb[0].mxu0
  %1440 = vmatprep.mubr.bf16.mxu0 %v569
  %1441 = vmatmul.mubr.bf16.gmra.mrb[0].mxu0 %v568
  %v1442 = vpop.f32.mrb[0].mxu0
  %v1443 = vadd.f32 0.0, %v1442
  %v1444 = vpop.f32.mrb[0].mxu0
  %v1445 = vpop.f32.mrb[0].mxu0
  %v1446 = vadd.f32 0.0, %v1445
  %v1447 = vpop.f32.mrb[0].mxu0
  %1448 = vmatprep.mubr.bf16.mxu0 %v577
  %1449 = vmatmul.mubr.bf16.gmra.mrb[0].mxu0 %v576
  %v1450 = vpop.f32.mrb[0].mxu0
  %v1451 = vadd.f32 0.0, %v1450
  %v1452 = vpop.f32.mrb[0].mxu0
  %v1453 = vpop.f32.mrb[0].mxu0
  %v1454 = vadd.f32 0.0, %v1453
  %v1455 = vpop.f32.mrb[0].mxu0
  %1456 = vdwg.mxu0
  %1457 = vmatprep.subr.bf16.mxu0 0
  %1458 = vmatpush1.bf16.msra.mxu0 %v1248
  %1459 = vmatprep.subr.bf16.mxu0 0
  %1460 = vmatpush1.bf16.msra.mxu0 %v1249
  %1461 = vmatprep.subr.bf16.mxu0 0
  %1462 = vmatpush1.bf16.msra.mxu0 %v1250
  %1463 = vmatprep.subr.bf16.mxu0 0
  %1464 = vmatpush1.bf16.msra.mxu0 %v1251
  %1465 = vmatprep.subr.bf16.mxu0 0
  %1466 = vmatpush1.bf16.msra.mxu0 %v1252
  %1467 = vmatprep.subr.bf16.mxu0 0
  %1468 = vmatpush1.bf16.msra.mxu0 %v1253
  %1469 = vmatprep.subr.bf16.mxu0 0
  %1470 = vmatpush1.bf16.msra.mxu0 %v1254
  %1471 = vmatprep.subr.bf16.mxu0 0
  %1472 = vmatpush1.bf16.msra.mxu0 %v1255
  %1473 = vmatprep.subr.bf16.mxu0 0
  %1474 = vmatpush1.bf16.msra.mxu0 %v1256
  %1475 = vmatprep.subr.bf16.mxu0 0
  %1476 = vmatpush1.bf16.msra.mxu0 %v1257
  %1477 = vmatprep.subr.bf16.mxu0 0
  %1478 = vmatpush1.bf16.msra.mxu0 %v1258
  %1479 = vmatprep.subr.bf16.mxu0 0
  %1480 = vmatpush1.bf16.msra.mxu0 %v1259
  %1481 = vmatprep.subr.bf16.mxu0 0
  %1482 = vmatpush1.bf16.msra.mxu0 %v1260
  %1483 = vmatprep.subr.bf16.mxu0 0
  %1484 = vmatpush1.bf16.msra.mxu0 %v1261
  %1485 = vmatprep.subr.bf16.mxu0 0
  %1486 = vmatpush1.bf16.msra.mxu0 %v1262
  %1487 = vmatprep.subr.bf16.mxu0 0
  %1488 = vmatpush1.bf16.msra.mxu0 %v1263
  %1489 = vmatprep.mubr.bf16.mxu0 %v523
  %1490 = vmatmul.mubr.bf16.gmra.mrb[0].mxu0 %v522
  %v1491 = vpop.f32.mrb[0].mxu0
  %v1492 = vadd.f32 %v1395, %v1491
  %v1493 = vpop.f32.mrb[0].mxu0
  %v1494 = vpop.f32.mrb[0].mxu0
  %v1495 = vadd.f32 %v1398, %v1494
  %v1496 = vpop.f32.mrb[0].mxu0
  %1497 = vmatprep.mubr.bf16.mxu0 %v531
  %1498 = vmatmul.mubr.bf16.gmra.mrb[0].mxu0 %v530
  %v1499 = vpop.f32.mrb[0].mxu0
  %v1500 = vadd.f32 %v1403, %v1499
  %v1501 = vpop.f32.mrb[0].mxu0
  %v1502 = vpop.f32.mrb[0].mxu0
  %v1503 = vadd.f32 %v1406, %v1502
  %v1504 = vpop.f32.mrb[0].mxu0
  %1505 = vmatprep.mubr.bf16.mxu0 %v539
  %1506 = vmatmul.mubr.bf16.gmra.mrb[0].mxu0 %v538
  %v1507 = vpop.f32.mrb[0].mxu0
  %v1508 = vadd.f32 %v1411, %v1507
  %v1509 = vpop.f32.mrb[0].mxu0
  %v1510 = vpop.f32.mrb[0].mxu0
  %v1511 = vadd.f32 %v1414, %v1510
  %v1512 = vpop.f32.mrb[0].mxu0
  %1513 = vmatprep.mubr.bf16.mxu0 %v547
  %1514 = vmatmul.mubr.bf16.gmra.mrb[0].mxu0 %v546
  %v1515 = vpop.f32.mrb[0].mxu0
  %v1516 = vadd.f32 %v1419, %v1515
  %v1517 = vpop.f32.mrb[0].mxu0
  %v1518 = vpop.f32.mrb[0].mxu0
  %v1519 = vadd.f32 %v1422, %v1518
  %v1520 = vpop.f32.mrb[0].mxu0
  %1521 = vmatprep.mubr.bf16.mxu0 %v555
  %1522 = vmatmul.mubr.bf16.gmra.mrb[0].mxu0 %v554
  %v1523 = vpop.f32.mrb[0].mxu0
  %v1524 = vadd.f32 %v1427, %v1523
  %v1525 = vpop.f32.mrb[0].mxu0
  %v1526 = vpop.f32.mrb[0].mxu0
  %v1527 = vadd.f32 %v1430, %v1526
  %v1528 = vpop.f32.mrb[0].mxu0
  %1529 = vmatprep.mubr.bf16.mxu0 %v563
  %1530 = vmatmul.mubr.bf16.gmra.mrb[0].mxu0 %v562
  %v1531 = vpop.f32.mrb[0].mxu0
  %v1532 = vadd.f32 %v1435, %v1531
  %v1533 = vpop.f32.mrb[0].mxu0
  %v1534 = vpop.f32.mrb[0].mxu0
  %v1535 = vadd.f32 %v1438, %v1534
  %v1536 = vpop.f32.mrb[0].mxu0
  %1537 = vmatprep.mubr.bf16.mxu0 %v571
  %1538 = vmatmul.mubr.bf16.gmra.mrb[0].mxu0 %v570
  %v1539 = vpop.f32.mrb[0].mxu0
  %v1540 = vadd.f32 %v1443, %v1539
  %v1541 = vpop.f32.mrb[0].mxu0
  %v1542 = vpop.f32.mrb[0].mxu0
  %v1543 = vadd.f32 %v1446, %v1542
  %v1544 = vpop.f32.mrb[0].mxu0
  %1545 = vmatprep.mubr.bf16.mxu0 %v579
  %1546 = vmatmul.mubr.bf16.gmra.mrb[0].mxu0 %v578
  %v1547 = vpop.f32.mrb[0].mxu0
  %v1548 = vadd.f32 %v1451, %v1547
  %v1549 = vpop.f32.mrb[0].mxu0
  %v1550 = vpop.f32.mrb[0].mxu0
  %v1551 = vadd.f32 %v1454, %v1550
  %v1552 = vpop.f32.mrb[0].mxu0
  %1553 = vdwg.mxu0
  %1554 = vmatprep.subr.bf16.mxu0 0
  %1555 = vmatpush1.bf16.msra.mxu0 %v1264
  %1556 = vmatprep.subr.bf16.mxu0 0
  %1557 = vmatpush1.bf16.msra.mxu0 %v1265
  %1558 = vmatprep.subr.bf16.mxu0 0
  %1559 = vmatpush1.bf16.msra.mxu0 %v1266
  %1560 = vmatprep.subr.bf16.mxu0 0
  %1561 = vmatpush1.bf16.msra.mxu0 %v1267
  %1562 = vmatprep.subr.bf16.mxu0 0
  %1563 = vmatpush1.bf16.msra.mxu0 %v1268
  %1564 = vmatprep.subr.bf16.mxu0 0
  %1565 = vmatpush1.bf16.msra.mxu0 %v1269
  %1566 = vmatprep.subr.bf16.mxu0 0
  %1567 = vmatpush1.bf16.msra.mxu0 %v1270
  %1568 = vmatprep.subr.bf16.mxu0 0
  %1569 = vmatpush1.bf16.msra.mxu0 %v1271
  %1570 = vmatprep.subr.bf16.mxu0 0
  %1571 = vmatpush1.bf16.msra.mxu0 %v1272
  %1572 = vmatprep.subr.bf16.mxu0 0
  %1573 = vmatpush1.bf16.msra.mxu0 %v1273
  %1574 = vmatprep.subr.bf16.mxu0 0
  %1575 = vmatpush1.bf16.msra.mxu0 %v1274
  %1576 = vmatprep.subr.bf16.mxu0 0
  %1577 = vmatpush1.bf16.msra.mxu0 %v1275
  %1578 = vmatprep.subr.bf16.mxu0 0
  %1579 = vmatpush1.bf16.msra.mxu0 %v1276
  %1580 = vmatprep.subr.bf16.mxu0 0
  %1581 = vmatpush1.bf16.msra.mxu0 %v1277
  %1582 = vmatprep.subr.bf16.mxu0 0
  %1583 = vmatpush1.bf16.msra.mxu0 %v1278
  %1584 = vmatprep.subr.bf16.mxu0 0
  %1585 = vmatpush1.bf16.msra.mxu0 %v1279
  %1586 = vmatprep.mubr.bf16.mxu0 %v525
  %1587 = vmatmul.mubr.bf16.gmra.mrb[0].mxu0 %v524
  %v1588 = vpop.f32.mrb[0].mxu0
  %v1589 = vadd.f32 %v1492, %v1588
  %v1590 = vpop.f32.mrb[0].mxu0
  %v1591 = vpop.f32.mrb[0].mxu0
  %v1592 = vadd.f32 %v1495, %v1591
  %v1593 = vpop.f32.mrb[0].mxu0
  %1594 = vmatprep.mubr.bf16.mxu0 %v533
  %1595 = vmatmul.mubr.bf16.gmra.mrb[0].mxu0 %v532
  %v1596 = vpop.f32.mrb[0].mxu0
  %v1597 = vadd.f32 %v1500, %v1596
  %v1598 = vpop.f32.mrb[0].mxu0
  %v1599 = vpop.f32.mrb[0].mxu0
  %v1600 = vadd.f32 %v1503, %v1599
  %v1601 = vpop.f32.mrb[0].mxu0
  %1602 = vmatprep.mubr.bf16.mxu0 %v541
  %1603 = vmatmul.mubr.bf16.gmra.mrb[0].mxu0 %v540
  %v1604 = vpop.f32.mrb[0].mxu0
  %v1605 = vadd.f32 %v1508, %v1604
  %v1606 = vpop.f32.mrb[0].mxu0
  %v1607 = vpop.f32.mrb[0].mxu0
  %v1608 = vadd.f32 %v1511, %v1607
  %v1609 = vpop.f32.mrb[0].mxu0
  %1610 = vmatprep.mubr.bf16.mxu0 %v549
  %1611 = vmatmul.mubr.bf16.gmra.mrb[0].mxu0 %v548
  %v1612 = vpop.f32.mrb[0].mxu0
  %v1613 = vadd.f32 %v1516, %v1612
  %v1614 = vpop.f32.mrb[0].mxu0
  %v1615 = vpop.f32.mrb[0].mxu0
  %v1616 = vadd.f32 %v1519, %v1615
  %v1617 = vpop.f32.mrb[0].mxu0
  %1618 = vmatprep.mubr.bf16.mxu0 %v557
  %1619 = vmatmul.mubr.bf16.gmra.mrb[0].mxu0 %v556
  %v1620 = vpop.f32.mrb[0].mxu0
  %v1621 = vadd.f32 %v1524, %v1620
  %v1622 = vpop.f32.mrb[0].mxu0
  %v1623 = vpop.f32.mrb[0].mxu0
  %v1624 = vadd.f32 %v1527, %v1623
  %v1625 = vpop.f32.mrb[0].mxu0
  %1626 = vmatprep.mubr.bf16.mxu0 %v565
  %1627 = vmatmul.mubr.bf16.gmra.mrb[0].mxu0 %v564
  %v1628 = vpop.f32.mrb[0].mxu0
  %v1629 = vadd.f32 %v1532, %v1628
  %v1630 = vpop.f32.mrb[0].mxu0
  %v1631 = vpop.f32.mrb[0].mxu0
  %v1632 = vadd.f32 %v1535, %v1631
  %v1633 = vpop.f32.mrb[0].mxu0
  %1634 = vmatprep.mubr.bf16.mxu0 %v573
  %1635 = vmatmul.mubr.bf16.gmra.mrb[0].mxu0 %v572
  %v1636 = vpop.f32.mrb[0].mxu0
  %v1637 = vadd.f32 %v1540, %v1636
  %v1638 = vpop.f32.mrb[0].mxu0
  %v1639 = vpop.f32.mrb[0].mxu0
  %v1640 = vadd.f32 %v1543, %v1639
  %v1641 = vpop.f32.mrb[0].mxu0
  %1642 = vmatprep.mubr.bf16.mxu0 %v581
  %1643 = vmatmul.mubr.bf16.gmra.mrb[0].mxu0 %v580
  %v1644 = vpop.f32.mrb[0].mxu0
  %v1645 = vadd.f32 %v1548, %v1644
  %v1646 = vpop.f32.mrb[0].mxu0
  %v1647 = vpop.f32.mrb[0].mxu0
  %v1648 = vadd.f32 %v1551, %v1647
  %v1649 = vpop.f32.mrb[0].mxu0
  %1650 = vdwg.mxu0
  %1651 = vmatprep.subr.bf16.mxu0 0
  %1652 = vmatpush1.bf16.msra.mxu0 %v1280
  %1653 = vmatprep.subr.bf16.mxu0 0
  %1654 = vmatpush1.bf16.msra.mxu0 %v1281
  %1655 = vmatprep.subr.bf16.mxu0 0
  %1656 = vmatpush1.bf16.msra.mxu0 %v1282
  %1657 = vmatprep.subr.bf16.mxu0 0
  %1658 = vmatpush1.bf16.msra.mxu0 %v1283
  %1659 = vmatprep.subr.bf16.mxu0 0
  %1660 = vmatpush1.bf16.msra.mxu0 %v1284
  %1661 = vmatprep.subr.bf16.mxu0 0
  %1662 = vmatpush1.bf16.msra.mxu0 %v1285
  %1663 = vmatprep.subr.bf16.mxu0 0
  %1664 = vmatpush1.bf16.msra.mxu0 %v1286
  %1665 = vmatprep.subr.bf16.mxu0 0
  %1666 = vmatpush1.bf16.msra.mxu0 %v1287
  %1667 = vmatprep.subr.bf16.mxu0 0
  %1668 = vmatpush1.bf16.msra.mxu0 %v1288
  %1669 = vmatprep.subr.bf16.mxu0 0
  %1670 = vmatpush1.bf16.msra.mxu0 %v1289
  %1671 = vmatprep.subr.bf16.mxu0 0
  %1672 = vmatpush1.bf16.msra.mxu0 %v1290
  %1673 = vmatprep.subr.bf16.mxu0 0
  %1674 = vmatpush1.bf16.msra.mxu0 %v1291
  %1675 = vmatprep.subr.bf16.mxu0 0
  %1676 = vmatpush1.bf16.msra.mxu0 %v1292
  %1677 = vmatprep.subr.bf16.mxu0 0
  %1678 = vmatpush1.bf16.msra.mxu0 %v1293
  %1679 = vmatprep.subr.bf16.mxu0 0
  %1680 = vmatpush1.bf16.msra.mxu0 %v1294
  %1681 = vmatprep.subr.bf16.mxu0 0
  %1682 = vmatpush1.bf16.msra.mxu0 %v1295
  %1683 = vmatprep.mubr.bf16.mxu0 %v527
  %1684 = vmatmul.mubr.bf16.gmra.mrb[0].mxu0 %v526
  %v1685 = vpop.f32.mrb[0].mxu0
  %v1686 = vadd.f32 %v1589, %v1685
  %v1687 = vpop.f32.mrb[0].mxu0
  %v1688 = vpop.f32.mrb[0].mxu0
  %v1689 = vadd.f32 %v1592, %v1688
  %v1690 = vpop.f32.mrb[0].mxu0
  %1691 = vmatprep.mubr.bf16.mxu0 %v535
  %1692 = vmatmul.mubr.bf16.gmra.mrb[0].mxu0 %v534
  %v1693 = vpop.f32.mrb[0].mxu0
  %v1694 = vadd.f32 %v1597, %v1693
  %v1695 = vpop.f32.mrb[0].mxu0
  %v1696 = vpop.f32.mrb[0].mxu0
  %v1697 = vadd.f32 %v1600, %v1696
  %v1698 = vpop.f32.mrb[0].mxu0
  %1699 = vmatprep.mubr.bf16.mxu0 %v543
  %1700 = vmatmul.mubr.bf16.gmra.mrb[0].mxu0 %v542
  %v1701 = vpop.f32.mrb[0].mxu0
  %v1702 = vadd.f32 %v1605, %v1701
  %v1703 = vpop.f32.mrb[0].mxu0
  %v1704 = vpop.f32.mrb[0].mxu0
  %v1705 = vadd.f32 %v1608, %v1704
  %v1706 = vpop.f32.mrb[0].mxu0
  %1707 = vmatprep.mubr.bf16.mxu0 %v551
  %1708 = vmatmul.mubr.bf16.gmra.mrb[0].mxu0 %v550
  %v1709 = vpop.f32.mrb[0].mxu0
  %v1710 = vadd.f32 %v1613, %v1709
  %v1711 = vpop.f32.mrb[0].mxu0
  %v1712 = vpop.f32.mrb[0].mxu0
  %v1713 = vadd.f32 %v1616, %v1712
  %v1714 = vpop.f32.mrb[0].mxu0
  %1715 = vmatprep.mubr.bf16.mxu0 %v559
  %1716 = vmatmul.mubr.bf16.gmra.mrb[0].mxu0 %v558
  %v1717 = vpop.f32.mrb[0].mxu0
  %v1718 = vadd.f32 %v1621, %v1717
  %v1719 = vpop.f32.mrb[0].mxu0
  %v1720 = vpop.f32.mrb[0].mxu0
  %v1721 = vadd.f32 %v1624, %v1720
  %v1722 = vpop.f32.mrb[0].mxu0
  %1723 = vmatprep.mubr.bf16.mxu0 %v567
  %1724 = vmatmul.mubr.bf16.gmra.mrb[0].mxu0 %v566
  %v1725 = vpop.f32.mrb[0].mxu0
  %v1726 = vadd.f32 %v1629, %v1725
  %v1727 = vpop.f32.mrb[0].mxu0
  %v1728 = vpop.f32.mrb[0].mxu0
  %v1729 = vadd.f32 %v1632, %v1728
  %v1730 = vpop.f32.mrb[0].mxu0
  %1731 = vmatprep.mubr.bf16.mxu0 %v575
  %1732 = vmatmul.mubr.bf16.gmra.mrb[0].mxu0 %v574
  %v1733 = vpop.f32.mrb[0].mxu0
  %v1734 = vadd.f32 %v1637, %v1733
  %v1735 = vpop.f32.mrb[0].mxu0
  %v1736 = vpop.f32.mrb[0].mxu0
  %v1737 = vadd.f32 %v1640, %v1736
  %v1738 = vpop.f32.mrb[0].mxu0
  %1739 = vmatprep.mubr.bf16.mxu0 %v583
  %1740 = vmatmul.mubr.bf16.gmra.mrb[0].mxu0 %v582
  %v1741 = vpop.f32.mrb[0].mxu0
  %v1742 = vadd.f32 %v1645, %v1741
  %v1743 = vpop.f32.mrb[0].mxu0
  %v1744 = vpop.f32.mrb[0].mxu0
  %v1745 = vadd.f32 %v1648, %v1744
  %v1746 = vpop.f32.mrb[0].mxu0
  %1747 = vdwg.mxu0
  %v1876 = vunpack.c.l.b16 %v688
  %v1877 = vunpack.c.l.b16 %v689
  %v1878 = vunpack.c.l.b16 %v690
  %v1879 = vunpack.c.l.b16 %v691
  %v1880 = vunpack.c.l.b16 %v692
  %v1881 = vunpack.c.l.b16 %v693
  %v1882 = vunpack.c.l.b16 %v694
  %v1883 = vunpack.c.l.b16 %v695
  %v1884 = vunpack.c.l.b16 %v696
  %v1885 = vunpack.c.l.b16 %v697
  %v1886 = vunpack.c.l.b16 %v698
  %v1887 = vunpack.c.l.b16 %v699
  %v1888 = vunpack.c.l.b16 %v700
  %v1889 = vunpack.c.l.b16 %v701
  %v1890 = vunpack.c.l.b16 %v702
  %v1891 = vunpack.c.l.b16 %v703
  %v1892 = vunpack.c.l.b16 %v704
  %v1893 = vunpack.c.l.b16 %v705
  %v1894 = vunpack.c.l.b16 %v706
  %v1895 = vunpack.c.l.b16 %v707
  %v1896 = vunpack.c.l.b16 %v708
  %v1897 = vunpack.c.l.b16 %v709
  %v1898 = vunpack.c.l.b16 %v710
  %v1899 = vunpack.c.l.b16 %v711
  %v1900 = vunpack.c.l.b16 %v712
  %v1901 = vunpack.c.l.b16 %v713
  %v1902 = vunpack.c.l.b16 %v714
  %v1903 = vunpack.c.l.b16 %v715
  %v1904 = vunpack.c.l.b16 %v716
  %v1905 = vunpack.c.l.b16 %v717
  %v1906 = vunpack.c.l.b16 %v718
  %v1907 = vunpack.c.l.b16 %v719
  %v1908 = vunpack.c.l.b16 %v720
  %v1909 = vunpack.c.l.b16 %v721
  %v1910 = vunpack.c.l.b16 %v722
  %v1911 = vunpack.c.l.b16 %v723
  %v1912 = vunpack.c.l.b16 %v724
  %v1913 = vunpack.c.l.b16 %v725
  %v1914 = vunpack.c.l.b16 %v726
  %v1915 = vunpack.c.l.b16 %v727
  %v1916 = vunpack.c.l.b16 %v728
  %v1917 = vunpack.c.l.b16 %v729
  %v1918 = vunpack.c.l.b16 %v730
  %v1919 = vunpack.c.l.b16 %v731
  %v1920 = vunpack.c.l.b16 %v732
  %v1921 = vunpack.c.l.b16 %v733
  %v1922 = vunpack.c.l.b16 %v734
  %v1923 = vunpack.c.l.b16 %v735
  %v1924 = vunpack.c.l.b16 %v736
  %v1925 = vunpack.c.l.b16 %v737
  %v1926 = vunpack.c.l.b16 %v738
  %v1927 = vunpack.c.l.b16 %v739
  %v1928 = vunpack.c.l.b16 %v740
  %v1929 = vunpack.c.l.b16 %v741
  %v1930 = vunpack.c.l.b16 %v742
  %v1931 = vunpack.c.l.b16 %v743
  %v1932 = vunpack.c.l.b16 %v744
  %v1933 = vunpack.c.l.b16 %v745
  %v1934 = vunpack.c.l.b16 %v746
  %v1935 = vunpack.c.l.b16 %v747
  %v1936 = vunpack.c.l.b16 %v748
  %v1937 = vunpack.c.l.b16 %v749
  %v1938 = vunpack.c.l.b16 %v750
  %v1939 = vunpack.c.l.b16 %v751
  %v1940 = vunpack.c.l.b16 %v752
  %v1941 = vunpack.c.l.b16 %v753
  %v1942 = vunpack.c.l.b16 %v754
  %v1943 = vunpack.c.l.b16 %v755
  %v1944 = vunpack.c.l.b16 %v756
  %v1945 = vunpack.c.l.b16 %v757
  %v1946 = vunpack.c.l.b16 %v758
  %v1947 = vunpack.c.l.b16 %v759
  %v1948 = vunpack.c.l.b16 %v760
  %v1949 = vunpack.c.l.b16 %v761
  %v1950 = vunpack.c.l.b16 %v762
  %v1951 = vunpack.c.l.b16 %v763
  %v1952 = vunpack.c.l.b16 %v764
  %v1953 = vunpack.c.l.b16 %v765
  %v1954 = vunpack.c.l.b16 %v766
  %v1955 = vunpack.c.l.b16 %v767
  %v1956 = vunpack.c.l.b16 %v768
  %v1957 = vunpack.c.l.b16 %v769
  %v1958 = vunpack.c.l.b16 %v770
  %v1959 = vunpack.c.l.b16 %v771
  %v1960 = vunpack.c.l.b16 %v772
  %v1961 = vunpack.c.l.b16 %v773
  %v1962 = vunpack.c.l.b16 %v774
  %v1963 = vunpack.c.l.b16 %v775
  %v1964 = vunpack.c.l.b16 %v776
  %v1965 = vunpack.c.l.b16 %v777
  %v1966 = vunpack.c.l.b16 %v778
  %v1967 = vunpack.c.l.b16 %v779
  %v1968 = vunpack.c.l.b16 %v780
  %v1969 = vunpack.c.l.b16 %v781
  %v1970 = vunpack.c.l.b16 %v782
  %v1971 = vunpack.c.l.b16 %v783
  %v1972 = vunpack.c.l.b16 %v784
  %v1973 = vunpack.c.l.b16 %v785
  %v1974 = vunpack.c.l.b16 %v786
  %v1975 = vunpack.c.l.b16 %v787
  %v1976 = vunpack.c.l.b16 %v788
  %v1977 = vunpack.c.l.b16 %v789
  %v1978 = vunpack.c.l.b16 %v790
  %v1979 = vunpack.c.l.b16 %v791
  %v1980 = vunpack.c.l.b16 %v792
  %v1981 = vunpack.c.l.b16 %v793
  %v1982 = vunpack.c.l.b16 %v794
  %v1983 = vunpack.c.l.b16 %v795
  %v1984 = vunpack.c.l.b16 %v796
  %v1985 = vunpack.c.l.b16 %v797
  %v1986 = vunpack.c.l.b16 %v798
  %v1987 = vunpack.c.l.b16 %v799
  %v1988 = vunpack.c.l.b16 %v800
  %v1989 = vunpack.c.l.b16 %v801
  %v1990 = vunpack.c.l.b16 %v802
  %v1991 = vunpack.c.l.b16 %v803
  %v1992 = vunpack.c.l.b16 %v804
  %v1993 = vunpack.c.l.b16 %v805
  %v1994 = vunpack.c.l.b16 %v806
  %v1995 = vunpack.c.l.b16 %v807
  %v1996 = vunpack.c.l.b16 %v808
  %v1997 = vunpack.c.l.b16 %v809
  %v1998 = vunpack.c.l.b16 %v810
  %v1999 = vunpack.c.l.b16 %v811
  %v2000 = vunpack.c.l.b16 %v812
  %v2001 = vunpack.c.l.b16 %v813
  %v2002 = vunpack.c.l.b16 %v814
  %v2003 = vunpack.c.l.b16 %v815
  %v2004 = vpack.c.b16 %v1877, %v1876
  %v2005 = vpack.c.b16 %v1879, %v1878
  %v2006 = vpack.c.b16 %v1881, %v1880
  %v2007 = vpack.c.b16 %v1883, %v1882
  %v2008 = vpack.c.b16 %v1885, %v1884
  %v2009 = vpack.c.b16 %v1887, %v1886
  %v2010 = vpack.c.b16 %v1889, %v1888
  %v2011 = vpack.c.b16 %v1891, %v1890
  %v2012 = vpack.c.b16 %v1893, %v1892
  %v2013 = vpack.c.b16 %v1895, %v1894
  %v2014 = vpack.c.b16 %v1897, %v1896
  %v2015 = vpack.c.b16 %v1899, %v1898
  %v2016 = vpack.c.b16 %v1901, %v1900
  %v2017 = vpack.c.b16 %v1903, %v1902
  %v2018 = vpack.c.b16 %v1905, %v1904
  %v2019 = vpack.c.b16 %v1907, %v1906
  %v2020 = vpack.c.b16 %v1909, %v1908
  %v2021 = vpack.c.b16 %v1911, %v1910
  %v2022 = vpack.c.b16 %v1913, %v1912
  %v2023 = vpack.c.b16 %v1915, %v1914
  %v2024 = vpack.c.b16 %v1917, %v1916
  %v2025 = vpack.c.b16 %v1919, %v1918
  %v2026 = vpack.c.b16 %v1921, %v1920
  %v2027 = vpack.c.b16 %v1923, %v1922
  %v2028 = vpack.c.b16 %v1925, %v1924
  %v2029 = vpack.c.b16 %v1927, %v1926
  %v2030 = vpack.c.b16 %v1929, %v1928
  %v2031 = vpack.c.b16 %v1931, %v1930
  %v2032 = vpack.c.b16 %v1933, %v1932
  %v2033 = vpack.c.b16 %v1935, %v1934
  %v2034 = vpack.c.b16 %v1937, %v1936
  %v2035 = vpack.c.b16 %v1939, %v1938
  %v2036 = vpack.c.b16 %v1941, %v1940
  %v2037 = vpack.c.b16 %v1943, %v1942
  %v2038 = vpack.c.b16 %v1945, %v1944
  %v2039 = vpack.c.b16 %v1947, %v1946
  %v2040 = vpack.c.b16 %v1949, %v1948
  %v2041 = vpack.c.b16 %v1951, %v1950
  %v2042 = vpack.c.b16 %v1953, %v1952
  %v2043 = vpack.c.b16 %v1955, %v1954
  %v2044 = vpack.c.b16 %v1957, %v1956
  %v2045 = vpack.c.b16 %v1959, %v1958
  %v2046 = vpack.c.b16 %v1961, %v1960
  %v2047 = vpack.c.b16 %v1963, %v1962
  %v2048 = vpack.c.b16 %v1965, %v1964
  %v2049 = vpack.c.b16 %v1967, %v1966
  %v2050 = vpack.c.b16 %v1969, %v1968
  %v2051 = vpack.c.b16 %v1971, %v1970
  %v2052 = vpack.c.b16 %v1973, %v1972
  %v2053 = vpack.c.b16 %v1975, %v1974
  %v2054 = vpack.c.b16 %v1977, %v1976
  %v2055 = vpack.c.b16 %v1979, %v1978
  %v2056 = vpack.c.b16 %v1981, %v1980
  %v2057 = vpack.c.b16 %v1983, %v1982
  %v2058 = vpack.c.b16 %v1985, %v1984
  %v2059 = vpack.c.b16 %v1987, %v1986
  %v2060 = vpack.c.b16 %v1989, %v1988
  %v2061 = vpack.c.b16 %v1991, %v1990
  %v2062 = vpack.c.b16 %v1993, %v1992
  %v2063 = vpack.c.b16 %v1995, %v1994
  %v2064 = vpack.c.b16 %v1997, %v1996
  %v2065 = vpack.c.b16 %v1999, %v1998
  %v2066 = vpack.c.b16 %v2001, %v2000
  %v2067 = vpack.c.b16 %v2003, %v2002
  %2132 = vmatprep.subr.bf16.mxu0 0
  %2133 = vmatpush1.bf16.msra.mxu0 %v2004
  %2134 = vmatprep.subr.bf16.mxu0 0
  %2135 = vmatpush1.bf16.msra.mxu0 %v2005
  %2136 = vmatprep.subr.bf16.mxu0 0
  %2137 = vmatpush1.bf16.msra.mxu0 %v2006
  %2138 = vmatprep.subr.bf16.mxu0 0
  %2139 = vmatpush1.bf16.msra.mxu0 %v2007
  %2140 = vmatprep.subr.bf16.mxu0 0
  %2141 = vmatpush1.bf16.msra.mxu0 %v2008
  %2142 = vmatprep.subr.bf16.mxu0 0
  %2143 = vmatpush1.bf16.msra.mxu0 %v2009
  %2144 = vmatprep.subr.bf16.mxu0 0
  %2145 = vmatpush1.bf16.msra.mxu0 %v2010
  %2146 = vmatprep.subr.bf16.mxu0 0
  %2147 = vmatpush1.bf16.msra.mxu0 %v2011
  %2148 = vmatprep.subr.bf16.mxu0 0
  %2149 = vmatpush1.bf16.msra.mxu0 %v2012
  %2150 = vmatprep.subr.bf16.mxu0 0
  %2151 = vmatpush1.bf16.msra.mxu0 %v2013
  %2152 = vmatprep.subr.bf16.mxu0 0
  %2153 = vmatpush1.bf16.msra.mxu0 %v2014
  %2154 = vmatprep.subr.bf16.mxu0 0
  %2155 = vmatpush1.bf16.msra.mxu0 %v2015
  %2156 = vmatprep.subr.bf16.mxu0 0
  %2157 = vmatpush1.bf16.msra.mxu0 %v2016
  %2158 = vmatprep.subr.bf16.mxu0 0
  %2159 = vmatpush1.bf16.msra.mxu0 %v2017
  %2160 = vmatprep.subr.bf16.mxu0 0
  %2161 = vmatpush1.bf16.msra.mxu0 %v2018
  %2162 = vmatprep.subr.bf16.mxu0 0
  %2163 = vmatpush1.bf16.msra.mxu0 %v2019
  %2164 = vmatprep.mubr.bf16.mxu0 %v521
  %2165 = vmatmul.mubr.bf16.gmra.mrb[0].mxu0 %v520
  %v2166 = vpop.f32.mrb[0].mxu0
  %v2167 = vadd.f32 %v1686, %v2166
  %v2168 = vpop.f32.mrb[0].mxu0
  %v2169 = vpop.f32.mrb[0].mxu0
  %v2170 = vadd.f32 %v1689, %v2169
  %v2171 = vpop.f32.mrb[0].mxu0
  %2172 = vmatprep.mubr.bf16.mxu0 %v529
  %2173 = vmatmul.mubr.bf16.gmra.mrb[0].mxu0 %v528
  %v2174 = vpop.f32.mrb[0].mxu0
  %v2175 = vadd.f32 %v1694, %v2174
  %v2176 = vpop.f32.mrb[0].mxu0
  %v2177 = vpop.f32.mrb[0].mxu0
  %v2178 = vadd.f32 %v1697, %v2177
  %v2179 = vpop.f32.mrb[0].mxu0
  %2180 = vmatprep.mubr.bf16.mxu0 %v537
  %2181 = vmatmul.mubr.bf16.gmra.mrb[0].mxu0 %v536
  %v2182 = vpop.f32.mrb[0].mxu0
  %v2183 = vadd.f32 %v1702, %v2182
  %v2184 = vpop.f32.mrb[0].mxu0
  %v2185 = vpop.f32.mrb[0].mxu0
  %v2186 = vadd.f32 %v1705, %v2185
  %v2187 = vpop.f32.mrb[0].mxu0
  %2188 = vmatprep.mubr.bf16.mxu0 %v545
  %2189 = vmatmul.mubr.bf16.gmra.mrb[0].mxu0 %v544
  %v2190 = vpop.f32.mrb[0].mxu0
  %v2191 = vadd.f32 %v1710, %v2190
  %v2192 = vpop.f32.mrb[0].mxu0
  %v2193 = vpop.f32.mrb[0].mxu0
  %v2194 = vadd.f32 %v1713, %v2193
  %v2195 = vpop.f32.mrb[0].mxu0
  %2196 = vmatprep.mubr.bf16.mxu0 %v553
  %2197 = vmatmul.mubr.bf16.gmra.mrb[0].mxu0 %v552
  %v2198 = vpop.f32.mrb[0].mxu0
  %v2199 = vadd.f32 %v1718, %v2198
  %v2200 = vpop.f32.mrb[0].mxu0
  %v2201 = vpop.f32.mrb[0].mxu0
  %v2202 = vadd.f32 %v1721, %v2201
  %v2203 = vpop.f32.mrb[0].mxu0
  %2204 = vmatprep.mubr.bf16.mxu0 %v561
  %2205 = vmatmul.mubr.bf16.gmra.mrb[0].mxu0 %v560
  %v2206 = vpop.f32.mrb[0].mxu0
  %v2207 = vadd.f32 %v1726, %v2206
  %v2208 = vpop.f32.mrb[0].mxu0
  %v2209 = vpop.f32.mrb[0].mxu0
  %v2210 = vadd.f32 %v1729, %v2209
  %v2211 = vpop.f32.mrb[0].mxu0
  %2212 = vmatprep.mubr.bf16.mxu0 %v569
  %2213 = vmatmul.mubr.bf16.gmra.mrb[0].mxu0 %v568
  %v2214 = vpop.f32.mrb[0].mxu0
  %v2215 = vadd.f32 %v1734, %v2214
  %v2216 = vpop.f32.mrb[0].mxu0
  %v2217 = vpop.f32.mrb[0].mxu0
  %v2218 = vadd.f32 %v1737, %v2217
  %v2219 = vpop.f32.mrb[0].mxu0
  %2220 = vmatprep.mubr.bf16.mxu0 %v577
  %2221 = vmatmul.mubr.bf16.gmra.mrb[0].mxu0 %v576
  %v2222 = vpop.f32.mrb[0].mxu0
  %v2223 = vadd.f32 %v1742, %v2222
  %v2224 = vpop.f32.mrb[0].mxu0
  %v2225 = vpop.f32.mrb[0].mxu0
  %v2226 = vadd.f32 %v1745, %v2225
  %v2227 = vpop.f32.mrb[0].mxu0
  %2228 = vdwg.mxu0
  %2229 = vmatprep.subr.bf16.mxu0 0
  %2230 = vmatpush1.bf16.msra.mxu0 %v2020
  %2231 = vmatprep.subr.bf16.mxu0 0
  %2232 = vmatpush1.bf16.msra.mxu0 %v2021
  %2233 = vmatprep.subr.bf16.mxu0 0
  %2234 = vmatpush1.bf16.msra.mxu0 %v2022
  %2235 = vmatprep.subr.bf16.mxu0 0
  %2236 = vmatpush1.bf16.msra.mxu0 %v2023
  %2237 = vmatprep.subr.bf16.mxu0 0
  %2238 = vmatpush1.bf16.msra.mxu0 %v2024
  %2239 = vmatprep.subr.bf16.mxu0 0
  %2240 = vmatpush1.bf16.msra.mxu0 %v2025
  %2241 = vmatprep.subr.bf16.mxu0 0
  %2242 = vmatpush1.bf16.msra.mxu0 %v2026
  %2243 = vmatprep.subr.bf16.mxu0 0
  %2244 = vmatpush1.bf16.msra.mxu0 %v2027
  %2245 = vmatprep.subr.bf16.mxu0 0
  %2246 = vmatpush1.bf16.msra.mxu0 %v2028
  %2247 = vmatprep.subr.bf16.mxu0 0
  %2248 = vmatpush1.bf16.msra.mxu0 %v2029
  %2249 = vmatprep.subr.bf16.mxu0 0
  %2250 = vmatpush1.bf16.msra.mxu0 %v2030
  %2251 = vmatprep.subr.bf16.mxu0 0
  %2252 = vmatpush1.bf16.msra.mxu0 %v2031
  %2253 = vmatprep.subr.bf16.mxu0 0
  %2254 = vmatpush1.bf16.msra.mxu0 %v2032
  %2255 = vmatprep.subr.bf16.mxu0 0
  %2256 = vmatpush1.bf16.msra.mxu0 %v2033
  %2257 = vmatprep.subr.bf16.mxu0 0
  %2258 = vmatpush1.bf16.msra.mxu0 %v2034
  %2259 = vmatprep.subr.bf16.mxu0 0
  %2260 = vmatpush1.bf16.msra.mxu0 %v2035
  %2261 = vmatprep.mubr.bf16.mxu0 %v523
  %2262 = vmatmul.mubr.bf16.gmra.mrb[0].mxu0 %v522
  %v2263 = vpop.f32.mrb[0].mxu0
  %v2264 = vadd.f32 %v2167, %v2263
  %v2265 = vpop.f32.mrb[0].mxu0
  %v2266 = vpop.f32.mrb[0].mxu0
  %v2267 = vadd.f32 %v2170, %v2266
  %v2268 = vpop.f32.mrb[0].mxu0
  %2269 = vmatprep.mubr.bf16.mxu0 %v531
  %2270 = vmatmul.mubr.bf16.gmra.mrb[0].mxu0 %v530
  %v2271 = vpop.f32.mrb[0].mxu0
  %v2272 = vadd.f32 %v2175, %v2271
  %v2273 = vpop.f32.mrb[0].mxu0
  %v2274 = vpop.f32.mrb[0].mxu0
  %v2275 = vadd.f32 %v2178, %v2274
  %v2276 = vpop.f32.mrb[0].mxu0
  %2277 = vmatprep.mubr.bf16.mxu0 %v539
  %2278 = vmatmul.mubr.bf16.gmra.mrb[0].mxu0 %v538
  %v2279 = vpop.f32.mrb[0].mxu0
  %v2280 = vadd.f32 %v2183, %v2279
  %v2281 = vpop.f32.mrb[0].mxu0
  %v2282 = vpop.f32.mrb[0].mxu0
  %v2283 = vadd.f32 %v2186, %v2282
  %v2284 = vpop.f32.mrb[0].mxu0
  %2285 = vmatprep.mubr.bf16.mxu0 %v547
  %2286 = vmatmul.mubr.bf16.gmra.mrb[0].mxu0 %v546
  %v2287 = vpop.f32.mrb[0].mxu0
  %v2288 = vadd.f32 %v2191, %v2287
  %v2289 = vpop.f32.mrb[0].mxu0
  %v2290 = vpop.f32.mrb[0].mxu0
  %v2291 = vadd.f32 %v2194, %v2290
  %v2292 = vpop.f32.mrb[0].mxu0
  %2293 = vmatprep.mubr.bf16.mxu0 %v555
  %2294 = vmatmul.mubr.bf16.gmra.mrb[0].mxu0 %v554
  %v2295 = vpop.f32.mrb[0].mxu0
  %v2296 = vadd.f32 %v2199, %v2295
  %v2297 = vpop.f32.mrb[0].mxu0
  %v2298 = vpop.f32.mrb[0].mxu0
  %v2299 = vadd.f32 %v2202, %v2298
  %v2300 = vpop.f32.mrb[0].mxu0
  %2301 = vmatprep.mubr.bf16.mxu0 %v563
  %2302 = vmatmul.mubr.bf16.gmra.mrb[0].mxu0 %v562
  %v2303 = vpop.f32.mrb[0].mxu0
  %v2304 = vadd.f32 %v2207, %v2303
  %v2305 = vpop.f32.mrb[0].mxu0
  %v2306 = vpop.f32.mrb[0].mxu0
  %v2307 = vadd.f32 %v2210, %v2306
  %v2308 = vpop.f32.mrb[0].mxu0
  %2309 = vmatprep.mubr.bf16.mxu0 %v571
  %2310 = vmatmul.mubr.bf16.gmra.mrb[0].mxu0 %v570
  %v2311 = vpop.f32.mrb[0].mxu0
  %v2312 = vadd.f32 %v2215, %v2311
  %v2313 = vpop.f32.mrb[0].mxu0
  %v2314 = vpop.f32.mrb[0].mxu0
  %v2315 = vadd.f32 %v2218, %v2314
  %v2316 = vpop.f32.mrb[0].mxu0
  %2317 = vmatprep.mubr.bf16.mxu0 %v579
  %2318 = vmatmul.mubr.bf16.gmra.mrb[0].mxu0 %v578
  %v2319 = vpop.f32.mrb[0].mxu0
  %v2320 = vadd.f32 %v2223, %v2319
  %v2321 = vpop.f32.mrb[0].mxu0
  %v2322 = vpop.f32.mrb[0].mxu0
  %v2323 = vadd.f32 %v2226, %v2322
  %v2324 = vpop.f32.mrb[0].mxu0
  %2325 = vdwg.mxu0
  %2326 = vmatprep.subr.bf16.mxu0 0
  %2327 = vmatpush1.bf16.msra.mxu0 %v2036
  %2328 = vmatprep.subr.bf16.mxu0 0
  %2329 = vmatpush1.bf16.msra.mxu0 %v2037
  %2330 = vmatprep.subr.bf16.mxu0 0
  %2331 = vmatpush1.bf16.msra.mxu0 %v2038
  %2332 = vmatprep.subr.bf16.mxu0 0
  %2333 = vmatpush1.bf16.msra.mxu0 %v2039
  %2334 = vmatprep.subr.bf16.mxu0 0
  %2335 = vmatpush1.bf16.msra.mxu0 %v2040
  %2336 = vmatprep.subr.bf16.mxu0 0
  %2337 = vmatpush1.bf16.msra.mxu0 %v2041
  %2338 = vmatprep.subr.bf16.mxu0 0
  %2339 = vmatpush1.bf16.msra.mxu0 %v2042
  %2340 = vmatprep.subr.bf16.mxu0 0
  %2341 = vmatpush1.bf16.msra.mxu0 %v2043
  %2342 = vmatprep.subr.bf16.mxu0 0
  %2343 = vmatpush1.bf16.msra.mxu0 %v2044
  %2344 = vmatprep.subr.bf16.mxu0 0
  %2345 = vmatpush1.bf16.msra.mxu0 %v2045
  %2346 = vmatprep.subr.bf16.mxu0 0
  %2347 = vmatpush1.bf16.msra.mxu0 %v2046
  %2348 = vmatprep.subr.bf16.mxu0 0
  %2349 = vmatpush1.bf16.msra.mxu0 %v2047
  %2350 = vmatprep.subr.bf16.mxu0 0
  %2351 = vmatpush1.bf16.msra.mxu0 %v2048
  %2352 = vmatprep.subr.bf16.mxu0 0
  %2353 = vmatpush1.bf16.msra.mxu0 %v2049
  %2354 = vmatprep.subr.bf16.mxu0 0
  %2355 = vmatpush1.bf16.msra.mxu0 %v2050
  %2356 = vmatprep.subr.bf16.mxu0 0
  %2357 = vmatpush1.bf16.msra.mxu0 %v2051
  %2358 = vmatprep.mubr.bf16.mxu0 %v525
  %2359 = vmatmul.mubr.bf16.gmra.mrb[0].mxu0 %v524
  %v2360 = vpop.f32.mrb[0].mxu0
  %v2361 = vadd.f32 %v2264, %v2360
  %v2362 = vpop.f32.mrb[0].mxu0
  %v2363 = vpop.f32.mrb[0].mxu0
  %v2364 = vadd.f32 %v2267, %v2363
  %v2365 = vpop.f32.mrb[0].mxu0
  %2366 = vmatprep.mubr.bf16.mxu0 %v533
  %2367 = vmatmul.mubr.bf16.gmra.mrb[0].mxu0 %v532
  %v2368 = vpop.f32.mrb[0].mxu0
  %v2369 = vadd.f32 %v2272, %v2368
  %v2370 = vpop.f32.mrb[0].mxu0
  %v2371 = vpop.f32.mrb[0].mxu0
  %v2372 = vadd.f32 %v2275, %v2371
  %v2373 = vpop.f32.mrb[0].mxu0
  %2374 = vmatprep.mubr.bf16.mxu0 %v541
  %2375 = vmatmul.mubr.bf16.gmra.mrb[0].mxu0 %v540
  %v2376 = vpop.f32.mrb[0].mxu0
  %v2377 = vadd.f32 %v2280, %v2376
  %v2378 = vpop.f32.mrb[0].mxu0
  %v2379 = vpop.f32.mrb[0].mxu0
  %v2380 = vadd.f32 %v2283, %v2379
  %v2381 = vpop.f32.mrb[0].mxu0
  %2382 = vmatprep.mubr.bf16.mxu0 %v549
  %2383 = vmatmul.mubr.bf16.gmra.mrb[0].mxu0 %v548
  %v2384 = vpop.f32.mrb[0].mxu0
  %v2385 = vadd.f32 %v2288, %v2384
  %v2386 = vpop.f32.mrb[0].mxu0
  %v2387 = vpop.f32.mrb[0].mxu0
  %v2388 = vadd.f32 %v2291, %v2387
  %v2389 = vpop.f32.mrb[0].mxu0
  %2390 = vmatprep.mubr.bf16.mxu0 %v557
  %2391 = vmatmul.mubr.bf16.gmra.mrb[0].mxu0 %v556
  %v2392 = vpop.f32.mrb[0].mxu0
  %v2393 = vadd.f32 %v2296, %v2392
  %v2394 = vpop.f32.mrb[0].mxu0
  %v2395 = vpop.f32.mrb[0].mxu0
  %v2396 = vadd.f32 %v2299, %v2395
  %v2397 = vpop.f32.mrb[0].mxu0
  %2398 = vmatprep.mubr.bf16.mxu0 %v565
  %2399 = vmatmul.mubr.bf16.gmra.mrb[0].mxu0 %v564
  %v2400 = vpop.f32.mrb[0].mxu0
  %v2401 = vadd.f32 %v2304, %v2400
  %v2402 = vpop.f32.mrb[0].mxu0
  %v2403 = vpop.f32.mrb[0].mxu0
  %v2404 = vadd.f32 %v2307, %v2403
  %v2405 = vpop.f32.mrb[0].mxu0
  %2406 = vmatprep.mubr.bf16.mxu0 %v573
  %2407 = vmatmul.mubr.bf16.gmra.mrb[0].mxu0 %v572
  %v2408 = vpop.f32.mrb[0].mxu0
  %v2409 = vadd.f32 %v2312, %v2408
  %v2410 = vpop.f32.mrb[0].mxu0
  %v2411 = vpop.f32.mrb[0].mxu0
  %v2412 = vadd.f32 %v2315, %v2411
  %v2413 = vpop.f32.mrb[0].mxu0
  %2414 = vmatprep.mubr.bf16.mxu0 %v581
  %2415 = vmatmul.mubr.bf16.gmra.mrb[0].mxu0 %v580
  %v2416 = vpop.f32.mrb[0].mxu0
  %v2417 = vadd.f32 %v2320, %v2416
  %v2418 = vpop.f32.mrb[0].mxu0
  %v2419 = vpop.f32.mrb[0].mxu0
  %v2420 = vadd.f32 %v2323, %v2419
  %v2421 = vpop.f32.mrb[0].mxu0
  %2422 = vdwg.mxu0
  %2423 = vmatprep.subr.bf16.mxu0 0
  %2424 = vmatpush1.bf16.msra.mxu0 %v2052
  %2425 = vmatprep.subr.bf16.mxu0 0
  %2426 = vmatpush1.bf16.msra.mxu0 %v2053
  %2427 = vmatprep.subr.bf16.mxu0 0
  %2428 = vmatpush1.bf16.msra.mxu0 %v2054
  %2429 = vmatprep.subr.bf16.mxu0 0
  %2430 = vmatpush1.bf16.msra.mxu0 %v2055
  %2431 = vmatprep.subr.bf16.mxu0 0
  %2432 = vmatpush1.bf16.msra.mxu0 %v2056
  %2433 = vmatprep.subr.bf16.mxu0 0
  %2434 = vmatpush1.bf16.msra.mxu0 %v2057
  %2435 = vmatprep.subr.bf16.mxu0 0
  %2436 = vmatpush1.bf16.msra.mxu0 %v2058
  %2437 = vmatprep.subr.bf16.mxu0 0
  %2438 = vmatpush1.bf16.msra.mxu0 %v2059
  %2439 = vmatprep.subr.bf16.mxu0 0
  %2440 = vmatpush1.bf16.msra.mxu0 %v2060
  %2441 = vmatprep.subr.bf16.mxu0 0
  %2442 = vmatpush1.bf16.msra.mxu0 %v2061
  %2443 = vmatprep.subr.bf16.mxu0 0
  %2444 = vmatpush1.bf16.msra.mxu0 %v2062
  %2445 = vmatprep.subr.bf16.mxu0 0
  %2446 = vmatpush1.bf16.msra.mxu0 %v2063
  %2447 = vmatprep.subr.bf16.mxu0 0
  %2448 = vmatpush1.bf16.msra.mxu0 %v2064
  %2449 = vmatprep.subr.bf16.mxu0 0
  %2450 = vmatpush1.bf16.msra.mxu0 %v2065
  %2451 = vmatprep.subr.bf16.mxu0 0
  %2452 = vmatpush1.bf16.msra.mxu0 %v2066
  %2453 = vmatprep.subr.bf16.mxu0 0
  %2454 = vmatpush1.bf16.msra.mxu0 %v2067
  %2455 = vmatprep.mubr.bf16.mxu0 %v527
  %2456 = vmatmul.mubr.bf16.gmra.mrb[0].mxu0 %v526
  %v2457 = vpop.f32.mrb[0].mxu0
  %v2458 = vadd.f32 %v2361, %v2457
  %v2459 = vpop.f32.mrb[0].mxu0
  %v2460 = vpop.f32.mrb[0].mxu0
  %v2461 = vadd.f32 %v2364, %v2460
  %v2462 = vpop.f32.mrb[0].mxu0
  %2463 = vmatprep.mubr.bf16.mxu0 %v535
  %2464 = vmatmul.mubr.bf16.gmra.mrb[0].mxu0 %v534
  %v2465 = vpop.f32.mrb[0].mxu0
  %v2466 = vadd.f32 %v2369, %v2465
  %v2467 = vpop.f32.mrb[0].mxu0
  %v2468 = vpop.f32.mrb[0].mxu0
  %v2469 = vadd.f32 %v2372, %v2468
  %v2470 = vpop.f32.mrb[0].mxu0
  %2471 = vmatprep.mubr.bf16.mxu0 %v543
  %2472 = vmatmul.mubr.bf16.gmra.mrb[0].mxu0 %v542
  %v2473 = vpop.f32.mrb[0].mxu0
  %v2474 = vadd.f32 %v2377, %v2473
  %v2475 = vpop.f32.mrb[0].mxu0
  %v2476 = vpop.f32.mrb[0].mxu0
  %v2477 = vadd.f32 %v2380, %v2476
  %v2478 = vpop.f32.mrb[0].mxu0
  %2479 = vmatprep.mubr.bf16.mxu0 %v551
  %2480 = vmatmul.mubr.bf16.gmra.mrb[0].mxu0 %v550
  %v2481 = vpop.f32.mrb[0].mxu0
  %v2482 = vadd.f32 %v2385, %v2481
  %v2483 = vpop.f32.mrb[0].mxu0
  %v2484 = vpop.f32.mrb[0].mxu0
  %v2485 = vadd.f32 %v2388, %v2484
  %v2486 = vpop.f32.mrb[0].mxu0
  %2487 = vmatprep.mubr.bf16.mxu0 %v559
  %2488 = vmatmul.mubr.bf16.gmra.mrb[0].mxu0 %v558
  %v2489 = vpop.f32.mrb[0].mxu0
  %v2490 = vadd.f32 %v2393, %v2489
  %v2491 = vpop.f32.mrb[0].mxu0
  %v2492 = vpop.f32.mrb[0].mxu0
  %v2493 = vadd.f32 %v2396, %v2492
  %v2494 = vpop.f32.mrb[0].mxu0
  %2495 = vmatprep.mubr.bf16.mxu0 %v567
  %2496 = vmatmul.mubr.bf16.gmra.mrb[0].mxu0 %v566
  %v2497 = vpop.f32.mrb[0].mxu0
  %v2498 = vadd.f32 %v2401, %v2497
  %v2499 = vpop.f32.mrb[0].mxu0
  %v2500 = vpop.f32.mrb[0].mxu0
  %v2501 = vadd.f32 %v2404, %v2500
  %v2502 = vpop.f32.mrb[0].mxu0
  %2503 = vmatprep.mubr.bf16.mxu0 %v575
  %2504 = vmatmul.mubr.bf16.gmra.mrb[0].mxu0 %v574
  %v2505 = vpop.f32.mrb[0].mxu0
  %v2506 = vadd.f32 %v2409, %v2505
  %v2507 = vpop.f32.mrb[0].mxu0
  %v2508 = vpop.f32.mrb[0].mxu0
  %v2509 = vadd.f32 %v2412, %v2508
  %v2510 = vpop.f32.mrb[0].mxu0
  %2511 = vmatprep.mubr.bf16.mxu0 %v583
  %2512 = vmatmul.mubr.bf16.gmra.mrb[0].mxu0 %v582
  %v2513 = vpop.f32.mrb[0].mxu0
  %v2514 = vadd.f32 %v2417, %v2513
  %v2515 = vpop.f32.mrb[0].mxu0
  %v2516 = vpop.f32.mrb[0].mxu0
  %v2517 = vadd.f32 %v2420, %v2516
  %v2518 = vpop.f32.mrb[0].mxu0
  %2519 = vdwg.mxu0
  %v2536 = vunpack.c.l.b16 %v944
  %v2537 = vunpack.c.l.b16 %v945
  %v2538 = vunpack.c.l.b16 %v946
  %v2539 = vunpack.c.l.b16 %v947
  %v2540 = vunpack.c.l.b16 %v948
  %v2541 = vunpack.c.l.b16 %v949
  %v2542 = vunpack.c.l.b16 %v950
  %v2543 = vunpack.c.l.b16 %v951
  %v2544 = vunpack.c.l.b16 %v952
  %v2545 = vunpack.c.l.b16 %v953
  %v2546 = vunpack.c.l.b16 %v954
  %v2547 = vunpack.c.l.b16 %v955
  %v2548 = vunpack.c.l.b16 %v956
  %v2549 = vunpack.c.l.b16 %v957
  %v2550 = vunpack.c.l.b16 %v958
  %v2551 = vunpack.c.l.b16 %v959
  %v2552 = vpack.c.b16 %v2537, %v2536
  %v2553 = vpack.c.b16 %v2539, %v2538
  %v2554 = vpack.c.b16 %v2541, %v2540
  %v2555 = vpack.c.b16 %v2543, %v2542
  %v2556 = vpack.c.b16 %v2545, %v2544
  %v2557 = vpack.c.b16 %v2547, %v2546
  %v2558 = vpack.c.b16 %v2549, %v2548
  %v2559 = vpack.c.b16 %v2551, %v2550
  %2568 = vmatprep.subr.bf16.mxu0 0
  %2569 = vmatpush1.bf16.msra.mxu0 %v2552
  %2570 = vmatprep.subr.bf16.mxu0 0
  %2571 = vmatpush1.bf16.msra.mxu0 %v2553
  %2572 = vmatprep.subr.bf16.mxu0 0
  %2573 = vmatpush1.bf16.msra.mxu0 %v2554
  %2574 = vmatprep.subr.bf16.mxu0 0
  %2575 = vmatpush1.bf16.msra.mxu0 %v2555
  %2576 = vmatprep.subr.bf16.mxu0 0
  %2577 = vmatpush1.bf16.msra.mxu0 %v2556
  %2578 = vmatprep.subr.bf16.mxu0 0
  %2579 = vmatpush1.bf16.msra.mxu0 %v2557
  %2580 = vmatprep.subr.bf16.mxu0 0
  %2581 = vmatpush1.bf16.msra.mxu0 %v2558
  %2582 = vmatprep.subr.bf16.mxu0 0
  %2583 = vmatpush1.bf16.msra.mxu0 %v2559
  %2584 = vmatprep.subr.bf16.mxu0 0
  %2585 = vmatpush1.bf16.msra.mxu0 0
  %2586 = vmatprep.subr.bf16.mxu0 0
  %2587 = vmatpush1.bf16.msra.mxu0 0
  %2588 = vmatprep.subr.bf16.mxu0 0
  %2589 = vmatpush1.bf16.msra.mxu0 0
  %2590 = vmatprep.subr.bf16.mxu0 0
  %2591 = vmatpush1.bf16.msra.mxu0 0
  %2592 = vmatprep.subr.bf16.mxu0 0
  %2593 = vmatpush1.bf16.msra.mxu0 0
  %2594 = vmatprep.subr.bf16.mxu0 0
  %2595 = vmatpush1.bf16.msra.mxu0 0
  %2596 = vmatprep.subr.bf16.mxu0 0
  %2597 = vmatpush1.bf16.msra.mxu0 0
  %2598 = vmatprep.subr.bf16.mxu0 0
  %2599 = vmatpush1.bf16.msra.mxu0 0
  %2600 = vmatprep.mubr.bf16.mxu0 0
  %2601 = vmatmul.mubr.bf16.gmra.mrb[0].mxu0 %v680
  %v2602 = vpop.f32.mrb[0].mxu0
  %v2603 = vadd.f32 0.0, %v2602
  %v2604 = vpop.f32.mrb[0].mxu0
  %v2605 = vpop.f32.mrb[0].mxu0
  %v2606 = vadd.f32 0.0, %v2605
  %v2607 = vpop.f32.mrb[0].mxu0
  %2608 = vmatprep.mubr.bf16.mxu0 0
  %2609 = vmatmul.mubr.bf16.gmra.mrb[0].mxu0 %v681
  %v2610 = vpop.f32.mrb[0].mxu0
  %v2611 = vadd.f32 0.0, %v2610
  %v2612 = vpop.f32.mrb[0].mxu0
  %v2613 = vpop.f32.mrb[0].mxu0
  %v2614 = vadd.f32 0.0, %v2613
  %v2615 = vpop.f32.mrb[0].mxu0
  %2616 = vmatprep.mubr.bf16.mxu0 0
  %2617 = vmatmul.mubr.bf16.gmra.mrb[0].mxu0 %v682
  %v2618 = vpop.f32.mrb[0].mxu0
  %v2619 = vadd.f32 0.0, %v2618
  %v2620 = vpop.f32.mrb[0].mxu0
  %v2621 = vpop.f32.mrb[0].mxu0
  %v2622 = vadd.f32 0.0, %v2621
  %v2623 = vpop.f32.mrb[0].mxu0
  %2624 = vmatprep.mubr.bf16.mxu0 0
  %2625 = vmatmul.mubr.bf16.gmra.mrb[0].mxu0 %v683
  %v2626 = vpop.f32.mrb[0].mxu0
  %v2627 = vadd.f32 0.0, %v2626
  %v2628 = vpop.f32.mrb[0].mxu0
  %v2629 = vpop.f32.mrb[0].mxu0
  %v2630 = vadd.f32 0.0, %v2629
  %v2631 = vpop.f32.mrb[0].mxu0
  %2632 = vmatprep.mubr.bf16.mxu0 0
  %2633 = vmatmul.mubr.bf16.gmra.mrb[0].mxu0 %v684
  %v2634 = vpop.f32.mrb[0].mxu0
  %v2635 = vadd.f32 0.0, %v2634
  %v2636 = vpop.f32.mrb[0].mxu0
  %v2637 = vpop.f32.mrb[0].mxu0
  %v2638 = vadd.f32 0.0, %v2637
  %v2639 = vpop.f32.mrb[0].mxu0
  %2640 = vmatprep.mubr.bf16.mxu0 0
  %2641 = vmatmul.mubr.bf16.gmra.mrb[0].mxu0 %v685
  %v2642 = vpop.f32.mrb[0].mxu0
  %v2643 = vadd.f32 0.0, %v2642
  %v2644 = vpop.f32.mrb[0].mxu0
  %v2645 = vpop.f32.mrb[0].mxu0
  %v2646 = vadd.f32 0.0, %v2645
  %v2647 = vpop.f32.mrb[0].mxu0
  %2648 = vmatprep.mubr.bf16.mxu0 0
  %2649 = vmatmul.mubr.bf16.gmra.mrb[0].mxu0 %v686
  %v2650 = vpop.f32.mrb[0].mxu0
  %v2651 = vadd.f32 0.0, %v2650
  %v2652 = vpop.f32.mrb[0].mxu0
  %v2653 = vpop.f32.mrb[0].mxu0
  %v2654 = vadd.f32 0.0, %v2653
  %v2655 = vpop.f32.mrb[0].mxu0
  %2656 = vmatprep.mubr.bf16.mxu0 0
  %2657 = vmatmul.mubr.bf16.gmra.mrb[0].mxu0 %v687
  %v2658 = vpop.f32.mrb[0].mxu0
  %v2659 = vadd.f32 0.0, %v2658
  %v2660 = vpop.f32.mrb[0].mxu0
  %v2661 = vpop.f32.mrb[0].mxu0
  %v2662 = vadd.f32 0.0, %v2661
  %v2663 = vpop.f32.mrb[0].mxu0
  %2664 = vdwg.mxu0
  %v2665 = vadd.f32 %v2458, %v2603
  %v2666 = vadd.f32 %v2461, %v2606
  %v2667 = vadd.f32 %v2466, %v2611
  %v2668 = vadd.f32 %v2469, %v2614
  %v2669 = vadd.f32 %v2474, %v2619
  %v2670 = vadd.f32 %v2477, %v2622
  %v2671 = vadd.f32 %v2482, %v2627
  %v2672 = vadd.f32 %v2485, %v2630
  %v2673 = vadd.f32 %v2490, %v2635
  %v2674 = vadd.f32 %v2493, %v2638
  %v2675 = vadd.f32 %v2498, %v2643
  %v2676 = vadd.f32 %v2501, %v2646
  %v2677 = vadd.f32 %v2506, %v2651
  %v2678 = vadd.f32 %v2509, %v2654
  %v2679 = vadd.f32 %v2514, %v2659
  %v2680 = vadd.f32 %v2517, %v2662
  %v2697 = vunpack.c.l.b16 %v960
  %v2698 = vunpack.c.l.b16 %v961
  %v2699 = vunpack.c.l.b16 %v962
  %v2700 = vunpack.c.l.b16 %v963
  %v2701 = vunpack.c.l.b16 %v964
  %v2702 = vunpack.c.l.b16 %v965
  %v2703 = vunpack.c.l.b16 %v966
  %v2704 = vunpack.c.l.b16 %v967
  %v2705 = vunpack.c.l.b16 %v968
  %v2706 = vunpack.c.l.b16 %v969
  %v2707 = vunpack.c.l.b16 %v970
  %v2708 = vunpack.c.l.b16 %v971
  %v2709 = vunpack.c.l.b16 %v972
  %v2710 = vunpack.c.l.b16 %v973
  %v2711 = vunpack.c.l.b16 %v974
  %v2712 = vunpack.c.l.b16 %v975
  %v2713 = vpack.c.b16 %v2698, %v2697
  %v2714 = vpack.c.b16 %v2700, %v2699
  %v2715 = vpack.c.b16 %v2702, %v2701
  %v2716 = vpack.c.b16 %v2704, %v2703
  %v2717 = vpack.c.b16 %v2706, %v2705
  %v2718 = vpack.c.b16 %v2708, %v2707
  %v2719 = vpack.c.b16 %v2710, %v2709
  %v2720 = vpack.c.b16 %v2712, %v2711
  %2729 = vmatprep.subr.bf16.mxu0 0
  %2730 = vmatpush1.bf16.msra.mxu0 %v2713
  %2731 = vmatprep.subr.bf16.mxu0 0
  %2732 = vmatpush1.bf16.msra.mxu0 %v2714
  %2733 = vmatprep.subr.bf16.mxu0 0
  %2734 = vmatpush1.bf16.msra.mxu0 %v2715
  %2735 = vmatprep.subr.bf16.mxu0 0
  %2736 = vmatpush1.bf16.msra.mxu0 %v2716
  %2737 = vmatprep.subr.bf16.mxu0 0
  %2738 = vmatpush1.bf16.msra.mxu0 %v2717
  %2739 = vmatprep.subr.bf16.mxu0 0
  %2740 = vmatpush1.bf16.msra.mxu0 %v2718
  %2741 = vmatprep.subr.bf16.mxu0 0
  %2742 = vmatpush1.bf16.msra.mxu0 %v2719
  %2743 = vmatprep.subr.bf16.mxu0 0
  %2744 = vmatpush1.bf16.msra.mxu0 %v2720
  %2745 = vmatprep.subr.bf16.mxu0 0
  %2746 = vmatpush1.bf16.msra.mxu0 0
  %2747 = vmatprep.subr.bf16.mxu0 0
  %2748 = vmatpush1.bf16.msra.mxu0 0
  %2749 = vmatprep.subr.bf16.mxu0 0
  %2750 = vmatpush1.bf16.msra.mxu0 0
  %2751 = vmatprep.subr.bf16.mxu0 0
  %2752 = vmatpush1.bf16.msra.mxu0 0
  %2753 = vmatprep.subr.bf16.mxu0 0
  %2754 = vmatpush1.bf16.msra.mxu0 0
  %2755 = vmatprep.subr.bf16.mxu0 0
  %2756 = vmatpush1.bf16.msra.mxu0 0
  %2757 = vmatprep.subr.bf16.mxu0 0
  %2758 = vmatpush1.bf16.msra.mxu0 0
  %2759 = vmatprep.subr.bf16.mxu0 0
  %2760 = vmatpush1.bf16.msra.mxu0 0
  %2761 = vmatprep.mubr.bf16.mxu0 0
  %2762 = vmatmul.mubr.bf16.gmra.mrb[0].mxu0 %v680
  %v2763 = vpop.f32.mrb[0].mxu0
  %v2764 = vadd.f32 0.0, %v2763
  %v2765 = vpop.f32.mrb[0].mxu0
  %v2766 = vpop.f32.mrb[0].mxu0
  %v2767 = vadd.f32 0.0, %v2766
  %v2768 = vpop.f32.mrb[0].mxu0
  %2769 = vmatprep.mubr.bf16.mxu0 0
  %2770 = vmatmul.mubr.bf16.gmra.mrb[0].mxu0 %v681
  %v2771 = vpop.f32.mrb[0].mxu0
  %v2772 = vadd.f32 0.0, %v2771
  %v2773 = vpop.f32.mrb[0].mxu0
  %v2774 = vpop.f32.mrb[0].mxu0
  %v2775 = vadd.f32 0.0, %v2774
  %v2776 = vpop.f32.mrb[0].mxu0
  %2777 = vmatprep.mubr.bf16.mxu0 0
  %2778 = vmatmul.mubr.bf16.gmra.mrb[0].mxu0 %v682
  %v2779 = vpop.f32.mrb[0].mxu0
  %v2780 = vadd.f32 0.0, %v2779
  %v2781 = vpop.f32.mrb[0].mxu0
  %v2782 = vpop.f32.mrb[0].mxu0
  %v2783 = vadd.f32 0.0, %v2782
  %v2784 = vpop.f32.mrb[0].mxu0
  %2785 = vmatprep.mubr.bf16.mxu0 0
  %2786 = vmatmul.mubr.bf16.gmra.mrb[0].mxu0 %v683
  %v2787 = vpop.f32.mrb[0].mxu0
  %v2788 = vadd.f32 0.0, %v2787
  %v2789 = vpop.f32.mrb[0].mxu0
  %v2790 = vpop.f32.mrb[0].mxu0
  %v2791 = vadd.f32 0.0, %v2790
  %v2792 = vpop.f32.mrb[0].mxu0
  %2793 = vmatprep.mubr.bf16.mxu0 0
  %2794 = vmatmul.mubr.bf16.gmra.mrb[0].mxu0 %v684
  %v2795 = vpop.f32.mrb[0].mxu0
  %v2796 = vadd.f32 0.0, %v2795
  %v2797 = vpop.f32.mrb[0].mxu0
  %v2798 = vpop.f32.mrb[0].mxu0
  %v2799 = vadd.f32 0.0, %v2798
  %v2800 = vpop.f32.mrb[0].mxu0
  %2801 = vmatprep.mubr.bf16.mxu0 0
  %2802 = vmatmul.mubr.bf16.gmra.mrb[0].mxu0 %v685
  %v2803 = vpop.f32.mrb[0].mxu0
  %v2804 = vadd.f32 0.0, %v2803
  %v2805 = vpop.f32.mrb[0].mxu0
  %v2806 = vpop.f32.mrb[0].mxu0
  %v2807 = vadd.f32 0.0, %v2806
  %v2808 = vpop.f32.mrb[0].mxu0
  %2809 = vmatprep.mubr.bf16.mxu0 0
  %2810 = vmatmul.mubr.bf16.gmra.mrb[0].mxu0 %v686
  %v2811 = vpop.f32.mrb[0].mxu0
  %v2812 = vadd.f32 0.0, %v2811
  %v2813 = vpop.f32.mrb[0].mxu0
  %v2814 = vpop.f32.mrb[0].mxu0
  %v2815 = vadd.f32 0.0, %v2814
  %v2816 = vpop.f32.mrb[0].mxu0
  %2817 = vmatprep.mubr.bf16.mxu0 0
  %2818 = vmatmul.mubr.bf16.gmra.mrb[0].mxu0 %v687
  %v2819 = vpop.f32.mrb[0].mxu0
  %v2820 = vadd.f32 0.0, %v2819
  %v2821 = vpop.f32.mrb[0].mxu0
  %v2822 = vpop.f32.mrb[0].mxu0
  %v2823 = vadd.f32 0.0, %v2822
  %v2824 = vpop.f32.mrb[0].mxu0
  %2825 = vdwg.mxu0
  %v2826 = vadd.f32 %v2665, %v2764
  %v2827 = vadd.f32 %v2666, %v2767
  %v2828 = vadd.f32 %v2667, %v2772
  %v2829 = vadd.f32 %v2668, %v2775
  %v2830 = vadd.f32 %v2669, %v2780
  %v2831 = vadd.f32 %v2670, %v2783
  %v2832 = vadd.f32 %v2671, %v2788
  %v2833 = vadd.f32 %v2672, %v2791
  %v2834 = vadd.f32 %v2673, %v2796
  %v2835 = vadd.f32 %v2674, %v2799
  %v2836 = vadd.f32 %v2675, %v2804
  %v2837 = vadd.f32 %v2676, %v2807
  %v2838 = vadd.f32 %v2677, %v2812
  %v2839 = vadd.f32 %v2678, %v2815
  %v2840 = vadd.f32 %v2679, %v2820
  %v2841 = vadd.f32 %v2680, %v2823
  %vm2842 = vcmask 261120
  %2843 = vst.msk [vmem:[%s3] sm:$0xff] %vm2842, %v2826
  %2844 = vst.msk [vmem:[%s3 + $0x8] sm:$0xff] %vm2842, %v2827
  %2845 = vst.msk [vmem:[%s3 + $0x10] sm:$0xff] %vm2842, %v2828
  %2846 = vst.msk [vmem:[%s3 + $0x18] sm:$0xff] %vm2842, %v2829
  %2847 = vst.msk [vmem:[%s3 + $0x20] sm:$0xff] %vm2842, %v2830
  %2848 = vst.msk [vmem:[%s3 + $0x28] sm:$0xff] %vm2842, %v2831
  %2849 = vst.msk [vmem:[%s3 + $0x30] sm:$0xff] %vm2842, %v2832
  %2850 = vst.msk [vmem:[%s3 + $0x38] sm:$0xff] %vm2842, %v2833
  %2851 = vst.msk [vmem:[%s3 + $0x40] sm:$0xff] %vm2842, %v2834
  %2852 = vst.msk [vmem:[%s3 + $0x48] sm:$0xff] %vm2842, %v2835
  %2853 = vst.msk [vmem:[%s3 + $0x50] sm:$0xff] %vm2842, %v2836
  %2854 = vst.msk [vmem:[%s3 + $0x58] sm:$0xff] %vm2842, %v2837
  %2855 = vst.msk [vmem:[%s3 + $0x60] sm:$0xff] %vm2842, %v2838
  %2856 = vst.msk [vmem:[%s3 + $0x68] sm:$0xff] %vm2842, %v2839
  %2857 = vst.msk [vmem:[%s3 + $0x70] sm:$0xff] %vm2842, %v2840
  %2858 = vst.msk [vmem:[%s3 + $0x78] sm:$0xff] %vm2842, %v2841
  // Predicated region
  $region14: #{beat_position_encoder.1} parent=0 // pred_check
    _
  $region15: #{beat_position_encoder.1} parent=0 // pred_check_branch
    %2860 = sbr.rel (0) target = $region17
  $region16: #{beat_position_encoder.1} parent=0 // pred_region
    _
  $region17: #{beat_position_encoder.1} parent=0 // pred_fallthru
    _
  // Predicated region
  $region18: #{beat_position_encoder.1} parent=0 // pred_check
    _
  $region19: #{beat_position_encoder.1} parent=0 // pred_check_branch
    %2862 = sbr.rel (0) target = $region21
  $region20: #{beat_position_encoder.1} parent=0 // pred_region
    _
  $region21: #{beat_position_encoder.1} parent=0 // pred_fallthru
    _

</llo_original>
